<compile_context>
chip_gen: v7x
topology: tpu7x:2x2x1
jax: 0.10.0
libtpu: 0.0.40
codegen_flags: <defaults>
</compile_context>

<pallas_src>
import functools

import jax
import jax.numpy as jnp
from jax import lax
from jax.experimental import pallas as pl
from jax.experimental.pallas import tpu as pltpu

NEG_SLOPE = 0.01  # nn.LeakyReLU default


def _leaky(x):
    return jnp.where(x > 0, x, NEG_SLOPE * x)


# -----------------------------------------------------------------------------
# One fused kernel: ConvTranspose(upsample) + add + depthwise 3x3 + 1x1 + Leaky
# -----------------------------------------------------------------------------
def up_fused_kernel(x1m_ref, x1t_ref, x1b_ref,
                    x2m_ref, x2t_ref, x2b_ref,
                    wup_ref, bup_ref, wbig_ref, bbig_ref,
                    o_ref, xph_ref, col_ref,
                    *, TH, W, Cin, C, s):
    f32 = jnp.float32
    bf16 = jnp.bfloat16
    sC = s * C
    ssC = s * s * C
    i = pl.program_id(1)
    n_row_tiles = pl.num_programs(1)

    # --- zero the W-padding columns of the scratch (image left/right border) ---
    # TODO(synk): could be hoisted to once-per-core, but there is no reliable
    #             "first iteration on this core" predicate under megacore; the
    #             cost is two 1-wide columns per step (negligible).
    xph_ref[:, :, 0:1, :] = jnp.zeros((s, TH + 2, 1, sC), f32)
    xph_ref[:, :, W + 1:W + 2, :] = jnp.zeros((s, TH + 2, 1, sC), f32)

    # --- stage 1: ConvTranspose for ALL s*s phases in one bf16 MXU matmul ------
    xf = x1m_ref[0].reshape(TH * W, Cin).astype(bf16)               # (TH*W, Cin)
    up = jnp.dot(xf, wup_ref[...], preferred_element_type=f32)      # (TH*W, s*s*C)
    up = _leaky(up + bup_ref[...]).reshape(TH, W, ssC)

    # add x2 and write the combined feature into the padded scratch, per row phase
    for ky in range(s):
        comb = up[:, :, ky * sC:(ky + 1) * sC] + x2m_ref[0, :, ky, :, :]
        xph_ref[ky, 1:TH + 1, 1:W + 1, :] = comb                    # (TH, W, s*C)

    # --- halo rows: one full-res row above / below the tile (zero at borders) --
    top_valid = (i > 0).astype(f32)
    bot_valid = (i < n_row_tiles - 1).astype(f32)

    x1t = x1t_ref[0, 0].astype(bf16)                                # (W, Cin)
    up_t = jnp.dot(x1t, wup_ref[:, (s - 1) * sC:(s - 1) * sC + sC],
                   preferred_element_type=f32)
    up_t = _leaky(up_t + bup_ref[:, (s - 1) * sC:(s - 1) * sC + sC])
    comb_t = (up_t + x2t_ref[0, 0, s - 1, :, :]) * top_valid        # (W, s*C)
    xph_ref[s - 1, 0, 1:W + 1, :] = comb_t

    x1b = x1b_ref[0, 0].astype(bf16)                                # (W, Cin)
    up_b = jnp.dot(x1b, wup_ref[:, 0:sC], preferred_element_type=f32)
    up_b = _leaky(up_b + bup_ref[:, 0:sC])
    comb_b = (up_b + x2b_ref[0, 0, 0, :, :]) * bot_valid            # (W, s*C)
    xph_ref[0, TH + 1, 1:W + 1, :] = comb_b

    # --- stage 2: depthwise 3x3 folded into the pointwise 1x1 as ONE bf16
    #     MXU matmul per output row phase; lane-dense (s*C) output stores. -----
    for ky in range(s):
        t = 0
        for r in range(3):                       # conv row tap
            rr = ky + r - 1
            p_r, dh = rr % s, rr // s             # scratch row-phase plane / shift
            for dc in (-1, 0, 1):                 # input column-group shift
                col_ref[:, :, t * sC:(t + 1) * sC] = \
                    xph_ref[p_r, 1 + dh:1 + dh + TH,
                            1 + dc:1 + dc + W, :].astype(bf16)
                t += 1
        y = jnp.dot(col_ref[...].reshape(TH * W, 9 * sC), wbig_ref[...],
                    preferred_element_type=f32)                     # (TH*W, s*C)
        y = _leaky(y + bbig_ref[...]).reshape(TH, W, sC)
        o_ref[0, :, ky, :, :] = y.astype(o_ref.dtype)


# -----------------------------------------------------------------------------
# Generation-aware VMEM budget and tile-size selection
# -----------------------------------------------------------------------------
def _vmem_budget():
    cap = 64 * 1024 * 1024  # safe default if the query fails
    try:
        cap = int(pltpu.get_tpu_info().vmem_capacity_bytes)
    except Exception:
        pass
    limit = min(cap * 3 // 4, 96 * 1024 * 1024)   # 96 MiB on v5e/v6e, 48 MiB on v7x
    limit = max(limit, 16 * 1024 * 1024)
    budget = int(limit * 0.55)                    # headroom for compiler temps
    return limit, budget


def _ceil_to(x, m):
    return -(-x // m) * m


def _est_vmem_bytes(TH, W, Cin, C, s):
    """Rough per-core VMEM footprint (lane-padded) for a given row-tile size."""
    sC, ssC = s * C, s * s * C
    cl = lambda c: _ceil_to(c, 128)
    b = 0
    b += 2 * (TH + 2) * W * cl(Cin) * 4                 # x1 main + halos (dbl buf)
    b += 2 * (TH + 2) * s * W * cl(sC) * 4              # x2 main + halos (dbl buf)
    b += 2 * TH * s * W * cl(sC) * 4                    # output block (dbl buf)
    b += s * (TH + 2) * (W + 2) * cl(sC) * 4            # combined-feature scratch
    b += TH * W * cl(9 * sC) * 2                        # im2col scratch (bf16)
    b += 2 * (Cin * cl(ssC) + 9 * sC * cl(sC)) * 2      # weights (bf16)
    b += TH * W * (cl(ssC) + 2 * cl(sC)) * 4            # big in-kernel f32 temps
    return b


def _pick_th(H, W, Cin, C, s, budget_bytes):
    fitting = [d for d in range(1, H + 1)
               if H % d == 0 and _est_vmem_bytes(d, W, Cin, C, s) <= budget_bytes]
    if not fitting:
        # TODO(synk): non-divisor TH (cdiv grid + in-kernel row masking) would
        #             avoid this fallback cliff; divisor tiles only for now.
        return 1
    preferred = [d for d in fitting if H // d >= 2]     # >=2 row tiles per image
    return max(preferred) if preferred else max(fitting)


# -----------------------------------------------------------------------------
# Weight preprocessing (hoisted out of the per-call path; do this once)
# -----------------------------------------------------------------------------
def prepare_params(params, scale):
    s = scale
    w_t = params["w_t"]                                   # (Cin, C, s, s)
    Cin, C = int(w_t.shape[0]), int(w_t.shape[1])
    sC, ssC = s * C, s * s * C

    # Upsample: one (Cin, s*s*C) matrix, columns packed as (ky, kx, co).
    w_up = jnp.transpose(w_t, (0, 2, 3, 1)).reshape(Cin, ssC)
    b_up = jnp.tile(params["b_t"], s * s).reshape(1, ssC)

    # Fold depthwise 3x3 into pointwise 1x1 and absorb the sub-pixel column
    # phase selection: rows packed as (row_tap r, col_group dc+1, col_phase p, ci),
    # columns packed as (kx, co).  Entries for unreachable taps are zero.
    w_dw = params["w_dw"][:, 0, :, :]                     # (C, 3, 3) -> [ci, r, c]
    w_pw = jnp.transpose(params["w_pw"][:, :, 0, 0], (1, 0))   # (ci, co)
    wbig = jnp.zeros((3, 3, s, C, s, C), jnp.float32)
    for r in range(3):
        for c in range(3):
            w_fold = w_dw[:, r, c][:, None] * w_pw        # (C, C)
            for kx in range(s):
                cc = kx + c - 1
                dc = cc // s                               # floor division
                p = cc - dc * s
                wbig = wbig.at[r, dc + 1, p, :, kx, :].set(w_fold)
    wbig = wbig.reshape(9 * sC, sC)
    b_big = params["b_dw"] @ w_pw + params["b_pw"]         # (C,)
    b_big = jnp.tile(b_big, s).reshape(1, sC)

    return {
        "w_up": w_up.astype(jnp.bfloat16),
        "b_up": b_up.astype(jnp.float32),
        "w_big": wbig.astype(jnp.bfloat16),
        "b_big": b_big.astype(jnp.float32),
    }


# -----------------------------------------------------------------------------
# NHWC-native forward (no wrapper transposes) and an NCHW wrapper for PyTorch
# interface parity.
# -----------------------------------------------------------------------------
def up_forward_nhwc(x1, x2, prepped, scale):
    s = scale
    x1 = x1.astype(jnp.float32)                           # (N, H, W, Cin)
    x2 = x2.astype(jnp.float32)                           # (N, H*s, W*s, C)
    N, H, W, Cin = x1.shape
    C = x2.shape[3]

    # free (layout-preserving) reshape into sub-pixel-factored form
    x2f = x2.reshape(N, H, s, W, s * C)

    vmem_limit, budget = _vmem_budget()
    TH = _pick_th(H, W, Cin, C, s, budget)
    grid = (N, H // TH)

    kernel = functools.partial(up_fused_kernel, TH=TH, W=W, Cin=Cin, C=C, s=s)

    out = pl.pallas_call(
        kernel,
        out_shape=jax.ShapeDtypeStruct((N, H, s, W, s * C), jnp.float32),
        grid_spec=pltpu.PrefetchScalarGridSpec(
            num_scalar_prefetch=0,
            grid=grid,
            in_specs=[
                # x1: main rows + 1-row halo above / below (clamped at the edges)
                # TODO(synk): could be merged into one (TH+2)-row stream with
                #             pl.Element offsets; kept split for correctness.
                pl.BlockSpec((1, TH, W, Cin), lambda n, i: (n, i, 0, 0)),
                pl.BlockSpec((1, 1, W, Cin),
                             lambda n, i: (n, jnp.maximum(i * TH - 1, 0), 0, 0)),
                pl.BlockSpec((1, 1, W, Cin),
                             lambda n, i: (n, jnp.minimum(i * TH + TH, H - 1), 0, 0)),
                # x2 (sub-pixel factored): main row-groups + halo row-groups
                pl.BlockSpec((1, TH, s, W, s * C), lambda n, i: (n, i, 0, 0, 0)),
                pl.BlockSpec((1, 1, s, W, s * C),
                             lambda n, i: (n, jnp.maximum(i * TH - 1, 0), 0, 0, 0)),
                pl.BlockSpec((1, 1, s, W, s * C),
                             lambda n, i: (n, jnp.minimum(i * TH + TH, H - 1), 0, 0, 0)),
                # weights / biases: small, resident across the whole grid
                pl.BlockSpec((Cin, s * s * C), lambda n, i: (0, 0)),
                pl.BlockSpec((1, s * s * C), lambda n, i: (0, 0)),
                pl.BlockSpec((9 * s * C, s * C), lambda n, i: (0, 0)),
                pl.BlockSpec((1, s * C), lambda n, i: (0, 0)),
            ],
            out_specs=pl.BlockSpec((1, TH, s, W, s * C),
                                   lambda n, i: (n, i, 0, 0, 0)),
            scratch_shapes=[
                pltpu.VMEM((s, TH + 2, W + 2, s * C), jnp.float32),   # combined feat
                pltpu.VMEM((TH, W, 9 * s * C), jnp.bfloat16),         # im2col buffer
            ],
        ),
        compiler_params=pltpu.CompilerParams(
            dimension_semantics=("parallel", "parallel"),
            vmem_limit_bytes=vmem_limit,
        ),
    )(x1, x1, x1, x2f, x2f, x2f,
      prepped["w_up"], prepped["b_up"], prepped["w_big"], prepped["b_big"])

    return out.reshape(N, H * s, W * s, C)


def up_forward(x1_nchw, x2_nchw, prepped, scale):
    """PyTorch-interface (NCHW) wrapper.  In an NHWC model use up_forward_nhwc
    directly and the wrapper transposes disappear."""
    x1 = jnp.transpose(x1_nchw, (0, 2, 3, 1))
    x2 = jnp.transpose(x2_nchw, (0, 2, 3, 1))
    out = up_forward_nhwc(x1, x2, prepped, scale)
    return jnp.transpose(out, (0, 3, 1, 2))


# -----------------------------------------------------------------------------
# Pure-JAX reference (lax.conv_general_dilated) for verification.
# -----------------------------------------------------------------------------
def ref_forward(x1, x2, params, scale):
    s = scale
    w_t = params["w_t"]                                           # (Cin, Cout, s, s)
    w_conv = jnp.transpose(w_t, (1, 0, 2, 3))[:, :, ::-1, ::-1]   # flipped (Cout,Cin,s,s)
    y = lax.conv_general_dilated(
        x1, w_conv, window_strides=(1, 1),
        padding=[(s - 1, s - 1), (s - 1, s - 1)], lhs_dilation=(s, s),
        dimension_numbers=("NCHW", "OIHW", "NCHW"))
    y = _leaky(y + params["b_t"][None, :, None, None])
    x = y + x2
    C = x.shape[1]
    xd = lax.conv_general_dilated(
        x, params["w_dw"], (1, 1), [(1, 1), (1, 1)],
        dimension_numbers=("NCHW", "OIHW", "NCHW"), feature_group_count=C)
    xd = xd + params["b_dw"][None, :, None, None]
    xp = lax.conv_general_dilated(
        xd, params["w_pw"], (1, 1), [(0, 0), (0, 0)],
        dimension_numbers=("NCHW", "OIHW", "NCHW"))
    xp = xp + params["b_pw"][None, :, None, None]
    return _leaky(xp)


if __name__ == "__main__":
    N, C_IN, C_OUT, H, W, SCALE = 2, 8, 8, 8, 8, 2

    key = jax.random.PRNGKey(0)
    k = jax.random.split(key, 8)
    params = {
        "w_t":  0.1 * jax.random.normal(k[0], (C_IN, C_OUT, SCALE, SCALE), jnp.float32),
        "b_t":  0.1 * jax.random.normal(k[1], (C_OUT,), jnp.float32),
        "w_dw": 0.1 * jax.random.normal(k[2], (C_OUT, 1, 3, 3), jnp.float32),
        "b_dw": 0.1 * jax.random.normal(k[3], (C_OUT,), jnp.float32),
        "w_pw": 0.1 * jax.random.normal(k[4], (C_OUT, C_OUT, 1, 1), jnp.float32),
        "b_pw": 0.1 * jax.random.normal(k[5], (C_OUT,), jnp.float32),
    }
    x1 = jax.random.normal(k[6], (N, C_IN, H, W), jnp.float32)
    x2 = jax.random.normal(k[7], (N, C_OUT, H * SCALE, W * SCALE), jnp.float32)

    prepped = prepare_params(params, SCALE)               # hoisted weight prep
    fwd = jax.jit(up_forward, static_argnames=("scale",))

    out = jax.block_until_ready(fwd(x1, x2, prepped, scale=SCALE))
    ref = jax.block_until_ready(ref_forward(x1, x2, params, SCALE))

    assert out.shape == (N, C_OUT, H * SCALE, W * SCALE)
    err = float(jnp.max(jnp.abs(out - ref)))
    # bf16 MXU operands (f32 accumulation) -> looser tolerance than pure-f32.
    assert jnp.allclose(out, ref, atol=2e-2, rtol=2e-2), f"max abs err {err}"

    print("KERNEL_OK")
</pallas_src>

<mosaic_0001>
module attributes {stable_mosaic.version = 11 : i64} {
  func.func @up_fused_kernel(%arg0: i32, %arg1: i32, %arg2: memref<1x4x8x8xf32, #tpu.memory_space<vmem>>, %arg3: memref<1x1x8x8xf32, #tpu.memory_space<vmem>>, %arg4: memref<1x1x8x8xf32, #tpu.memory_space<vmem>>, %arg5: memref<1x4x2x8x16xf32, #tpu.memory_space<vmem>>, %arg6: memref<1x1x2x8x16xf32, #tpu.memory_space<vmem>>, %arg7: memref<1x1x2x8x16xf32, #tpu.memory_space<vmem>>, %arg8: memref<8x32xbf16, #tpu.memory_space<vmem>>, %arg9: memref<1x32xf32, #tpu.memory_space<vmem>>, %arg10: memref<144x16xbf16, #tpu.memory_space<vmem>>, %arg11: memref<1x16xf32, #tpu.memory_space<vmem>>, %arg12: memref<1x4x2x8x16xf32, #tpu.memory_space<vmem>>, %arg13: memref<2x6x10x16xf32, #tpu.memory_space<vmem>>, %arg14: memref<4x8x144xbf16, #tpu.memory_space<vmem>>) attributes {dimension_semantics = [#tpu.dimension_semantics<parallel>, #tpu.dimension_semantics<parallel>], iteration_bounds = array<i64: 2, 2>, scalar_prefetch = 0 : i64, scratch_operands = 2 : i64, tpu.core_type = #tpu.core_type<tc>, window_params = [{transform_indices = @transform_0, window_bounds = array<i64: 1, 4, 8, 8>}, {transform_indices = @transform_1, window_bounds = array<i64: 1, 1, 8, 8>}, {transform_indices = @transform_2, window_bounds = array<i64: 1, 1, 8, 8>}, {transform_indices = @transform_3, window_bounds = array<i64: 1, 4, 2, 8, 16>}, {transform_indices = @transform_4, window_bounds = array<i64: 1, 1, 2, 8, 16>}, {transform_indices = @transform_5, window_bounds = array<i64: 1, 1, 2, 8, 16>}, {pipeline_mode = #tpu.pipeline_mode<synchronous>, transform_indices = @transform_6, window_bounds = array<i64: 8, 32>}, {pipeline_mode = #tpu.pipeline_mode<synchronous>, transform_indices = @transform_7, window_bounds = array<i64: 1, 32>}, {pipeline_mode = #tpu.pipeline_mode<synchronous>, transform_indices = @transform_8, window_bounds = array<i64: 144, 16>}, {pipeline_mode = #tpu.pipeline_mode<synchronous>, transform_indices = @transform_9, window_bounds = array<i64: 1, 16>}, {transform_indices = @transform_10, window_bounds = array<i64: 1, 4, 2, 8, 16>}]} {
    %cst = arith.constant 0.000000e+00 : f32
    %0 = vector.broadcast %cst : f32 to vector<2x6x1x16xf32>
    %c0 = arith.constant 0 : index
    %c0_0 = arith.constant 0 : index
    %c0_1 = arith.constant 0 : index
    %c0_2 = arith.constant 0 : index
    %1 = vector.load %arg13[%c0, %c0_0, %c0_1, %c0_2] : memref<2x6x10x16xf32, #tpu.memory_space<vmem>>, vector<2x6x1x16xf32>
    tpu.vector_store %arg13[%c0, %c0_0, %c0_1, %c0_2], %0 {strides = array<i32>} : memref<2x6x10x16xf32, #tpu.memory_space<vmem>>, vector<2x6x1x16xf32>,
    %cst_3 = arith.constant 0.000000e+00 : f32
    %2 = vector.broadcast %cst_3 : f32 to vector<2x6x1x16xf32>
    %c0_4 = arith.constant 0 : index
    %c0_5 = arith.constant 0 : index
    %c9 = arith.constant 9 : index
    %c0_6 = arith.constant 0 : index
    %3 = vector.load %arg13[%c0_4, %c0_5, %c9, %c0_6] : memref<2x6x10x16xf32, #tpu.memory_space<vmem>>, vector<2x6x1x16xf32>
    tpu.vector_store %arg13[%c0_4, %c0_5, %c9, %c0_6], %2 {strides = array<i32>} : memref<2x6x10x16xf32, #tpu.memory_space<vmem>>, vector<2x6x1x16xf32>,
    %c0_7 = arith.constant 0 : index
    %c0_8 = arith.constant 0 : index
    %c0_9 = arith.constant 0 : index
    %c0_10 = arith.constant 0 : index
    %4 = vector.load %arg2[%c0_7, %c0_8, %c0_9, %c0_10] : memref<1x4x8x8xf32, #tpu.memory_space<vmem>>, vector<1x4x8x8xf32>
    %5 = vector.shape_cast %4 : vector<1x4x8x8xf32> to vector<4x8x8xf32>
    %6 = vector.shape_cast %5 : vector<4x8x8xf32> to vector<32x8xf32>
    %7 = arith.truncf %6 : vector<32x8xf32> to vector<32x8xbf16>
    %c0_11 = arith.constant 0 : index
    %c0_12 = arith.constant 0 : index
    %8 = vector.load %arg8[%c0_11, %c0_12] : memref<8x32xbf16, #tpu.memory_space<vmem>>, vector<8x32xbf16>
    %cst_13 = arith.constant dense<0.000000e+00> : vector<32x32xf32>
    %9 = tpu.matmul %7, %8, %cst_13 {dimension_numbers = #tpu.dot_dimension_numbers<[1], [0], [0], [1], [0, 0, 1, 1], [], []>} : vector<32x8xbf16>, vector<8x32xbf16>, vector<32x32xf32> -> vector<32x32xf32>
    %c0_14 = arith.constant 0 : index
    %c0_15 = arith.constant 0 : index
    %10 = vector.load %arg9[%c0_14, %c0_15] : memref<1x32xf32, #tpu.memory_space<vmem>>, vector<1x32xf32>
    %11 = vector.broadcast %10 : vector<1x32xf32> to vector<32x32xf32>
    %12 = arith.addf %9, %11 : vector<32x32xf32>
    %cst_16 = arith.constant 0.000000e+00 : f32
    %13 = vector.broadcast %cst_16 : f32 to vector<32x32xf32>
    %14 = arith.cmpf ogt, %12, %13 : vector<32x32xf32>
    %cst_17 = arith.constant 0.00999999977 : f32
    %15 = vector.broadcast %cst_17 : f32 to vector<32x32xf32>
    %16 = arith.mulf %15, %12 : vector<32x32xf32>
    %17 = arith.select %14, %12, %16 : vector<32x32xi1>, vector<32x32xf32>
    %18 = vector.shape_cast %17 : vector<32x32xf32> to vector<4x8x32xf32>
    %19 = vector.extract_strided_slice %18 {offsets = [0, 0, 0], sizes = [4, 8, 16], strides = [1, 1, 1]} : vector<4x8x32xf32> to vector<4x8x16xf32>
    %c0_18 = arith.constant 0 : index
    %c0_19 = arith.constant 0 : index
    %c0_20 = arith.constant 0 : index
    %c0_21 = arith.constant 0 : index
    %c0_22 = arith.constant 0 : index
    %20 = vector.load %arg5[%c0_18, %c0_19, %c0_20, %c0_21, %c0_22] : memref<1x4x2x8x16xf32, #tpu.memory_space<vmem>>, vector<1x4x1x8x16xf32>
    %21 = vector.shape_cast %20 : vector<1x4x1x8x16xf32> to vector<4x8x16xf32>
    %22 = arith.addf %19, %21 : vector<4x8x16xf32>
    %c0_23 = arith.constant 0 : index
    %c1 = arith.constant 1 : index
    %c1_24 = arith.constant 1 : index
    %c0_25 = arith.constant 0 : index
    %23 = vector.load %arg13[%c0_23, %c1, %c1_24, %c0_25] : memref<2x6x10x16xf32, #tpu.memory_space<vmem>>, vector<1x4x8x16xf32>
    %24 = vector.shape_cast %23 : vector<1x4x8x16xf32> to vector<4x8x16xf32>
    %25 = vector.shape_cast %22 : vector<4x8x16xf32> to vector<1x4x8x16xf32>
    tpu.vector_store %arg13[%c0_23, %c1, %c1_24, %c0_25], %25 {strides = array<i32>} : memref<2x6x10x16xf32, #tpu.memory_space<vmem>>, vector<1x4x8x16xf32>,
    %26 = vector.extract_strided_slice %18 {offsets = [0, 0, 16], sizes = [4, 8, 16], strides = [1, 1, 1]} : vector<4x8x32xf32> to vector<4x8x16xf32>
    %c0_26 = arith.constant 0 : index
    %c0_27 = arith.constant 0 : index
    %c1_28 = arith.constant 1 : index
    %c0_29 = arith.constant 0 : index
    %c0_30 = arith.constant 0 : index
    %27 = vector.load %arg5[%c0_26, %c0_27, %c1_28, %c0_29, %c0_30] : memref<1x4x2x8x16xf32, #tpu.memory_space<vmem>>, vector<1x4x1x8x16xf32>
    %28 = vector.shape_cast %27 : vector<1x4x1x8x16xf32> to vector<4x8x16xf32>
    %29 = arith.addf %26, %28 : vector<4x8x16xf32>
    %c1_31 = arith.constant 1 : index
    %c1_32 = arith.constant 1 : index
    %c1_33 = arith.constant 1 : index
    %c0_34 = arith.constant 0 : index
    %30 = vector.load %arg13[%c1_31, %c1_32, %c1_33, %c0_34] : memref<2x6x10x16xf32, #tpu.memory_space<vmem>>, vector<1x4x8x16xf32>
    %31 = vector.shape_cast %30 : vector<1x4x8x16xf32> to vector<4x8x16xf32>
    %32 = vector.shape_cast %29 : vector<4x8x16xf32> to vector<1x4x8x16xf32>
    tpu.vector_store %arg13[%c1_31, %c1_32, %c1_33, %c0_34], %32 {strides = array<i32>} : memref<2x6x10x16xf32, #tpu.memory_space<vmem>>, vector<1x4x8x16xf32>,
    %c0_i32 = arith.constant 0 : i32
    %33 = arith.cmpi sgt, %arg1, %c0_i32 : i32
    %34 = arith.extui %33 : i1 to i32
    %35 = arith.sitofp %34 : i32 to f32
    %c1_i32 = arith.constant 1 : i32
    %36 = arith.cmpi slt, %arg1, %c1_i32 : i32
    %37 = arith.extui %36 : i1 to i32
    %38 = arith.sitofp %37 : i32 to f32
    %c0_35 = arith.constant 0 : index
    %c0_36 = arith.constant 0 : index
    %c0_37 = arith.constant 0 : index
    %c0_38 = arith.constant 0 : index
    %39 = vector.load %arg3[%c0_35, %c0_36, %c0_37, %c0_38] : memref<1x1x8x8xf32, #tpu.memory_space<vmem>>, vector<1x1x8x8xf32>
    %40 = vector.shape_cast %39 : vector<1x1x8x8xf32> to vector<8x8xf32>
    %41 = arith.truncf %40 : vector<8x8xf32> to vector<8x8xbf16>
    %c0_39 = arith.constant 0 : index
    %c16 = arith.constant 16 : index
    %42 = vector.load %arg8[%c0_39, %c16] : memref<8x32xbf16, #tpu.memory_space<vmem>>, vector<8x16xbf16>
    %cst_40 = arith.constant dense<0.000000e+00> : vector<8x16xf32>
    %43 = tpu.matmul %41, %42, %cst_40 {dimension_numbers = #tpu.dot_dimension_numbers<[1], [0], [0], [1], [0, 0, 1, 1], [], []>} : vector<8x8xbf16>, vector<8x16xbf16>, vector<8x16xf32> -> vector<8x16xf32>
    %c0_41 = arith.constant 0 : index
    %c16_42 = arith.constant 16 : index
    %44 = vector.load %arg9[%c0_41, %c16_42] : memref<1x32xf32, #tpu.memory_space<vmem>>, vector<1x16xf32>
    %45 = vector.broadcast %44 : vector<1x16xf32> to vector<8x16xf32>
    %46 = arith.addf %43, %45 : vector<8x16xf32>
    %cst_43 = arith.constant 0.000000e+00 : f32
    %47 = vector.broadcast %cst_43 : f32 to vector<8x16xf32>
    %48 = arith.cmpf ogt, %46, %47 : vector<8x16xf32>
    %cst_44 = arith.constant 0.00999999977 : f32
    %49 = vector.broadcast %cst_44 : f32 to vector<8x16xf32>
    %50 = arith.mulf %49, %46 : vector<8x16xf32>
    %51 = arith.select %48, %46, %50 : vector<8x16xi1>, vector<8x16xf32>
    %c0_45 = arith.constant 0 : index
    %c0_46 = arith.constant 0 : index
    %c1_47 = arith.constant 1 : index
    %c0_48 = arith.constant 0 : index
    %c0_49 = arith.constant 0 : index
    %52 = vector.load %arg6[%c0_45, %c0_46, %c1_47, %c0_48, %c0_49] : memref<1x1x2x8x16xf32, #tpu.memory_space<vmem>>, vector<1x1x1x8x16xf32>
    %53 = vector.shape_cast %52 : vector<1x1x1x8x16xf32> to vector<8x16xf32>
    %54 = arith.addf %51, %53 : vector<8x16xf32>
    %55 = vector.broadcast %35 : f32 to vector<8x16xf32>
    %56 = arith.mulf %54, %55 : vector<8x16xf32>
    %c1_50 = arith.constant 1 : index
    %c0_51 = arith.constant 0 : index
    %c1_52 = arith.constant 1 : index
    %c0_53 = arith.constant 0 : index
    %57 = vector.load %arg13[%c1_50, %c0_51, %c1_52, %c0_53] : memref<2x6x10x16xf32, #tpu.memory_space<vmem>>, vector<1x1x8x16xf32>
    %58 = vector.shape_cast %57 : vector<1x1x8x16xf32> to vector<8x16xf32>
    %59 = vector.shape_cast %56 : vector<8x16xf32> to vector<1x1x8x16xf32>
    tpu.vector_store %arg13[%c1_50, %c0_51, %c1_52, %c0_53], %59 {strides = array<i32>} : memref<2x6x10x16xf32, #tpu.memory_space<vmem>>, vector<1x1x8x16xf32>,
    %c0_54 = arith.constant 0 : index
    %c0_55 = arith.constant 0 : index
    %c0_56 = arith.constant 0 : index
    %c0_57 = arith.constant 0 : index
    %60 = vector.load %arg4[%c0_54, %c0_55, %c0_56, %c0_57] : memref<1x1x8x8xf32, #tpu.memory_space<vmem>>, vector<1x1x8x8xf32>
    %61 = vector.shape_cast %60 : vector<1x1x8x8xf32> to vector<8x8xf32>
    %62 = arith.truncf %61 : vector<8x8xf32> to vector<8x8xbf16>
    %c0_58 = arith.constant 0 : index
    %c0_59 = arith.constant 0 : index
    %63 = vector.load %arg8[%c0_58, %c0_59] : memref<8x32xbf16, #tpu.memory_space<vmem>>, vector<8x16xbf16>
    %cst_60 = arith.constant dense<0.000000e+00> : vector<8x16xf32>
    %64 = tpu.matmul %62, %63, %cst_60 {dimension_numbers = #tpu.dot_dimension_numbers<[1], [0], [0], [1], [0, 0, 1, 1], [], []>} : vector<8x8xbf16>, vector<8x16xbf16>, vector<8x16xf32> -> vector<8x16xf32>
    %c0_61 = arith.constant 0 : index
    %c0_62 = arith.constant 0 : index
    %65 = vector.load %arg9[%c0_61, %c0_62] : memref<1x32xf32, #tpu.memory_space<vmem>>, vector<1x16xf32>
    %66 = vector.broadcast %65 : vector<1x16xf32> to vector<8x16xf32>
    %67 = arith.addf %64, %66 : vector<8x16xf32>
    %cst_63 = arith.constant 0.000000e+00 : f32
    %68 = vector.broadcast %cst_63 : f32 to vector<8x16xf32>
    %69 = arith.cmpf ogt, %67, %68 : vector<8x16xf32>
    %cst_64 = arith.constant 0.00999999977 : f32
    %70 = vector.broadcast %cst_64 : f32 to vector<8x16xf32>
    %71 = arith.mulf %70, %67 : vector<8x16xf32>
    %72 = arith.select %69, %67, %71 : vector<8x16xi1>, vector<8x16xf32>
    %c0_65 = arith.constant 0 : index
    %c0_66 = arith.constant 0 : index
    %c0_67 = arith.constant 0 : index
    %c0_68 = arith.constant 0 : index
    %c0_69 = arith.constant 0 : index
    %73 = vector.load %arg7[%c0_65, %c0_66, %c0_67, %c0_68, %c0_69] : memref<1x1x2x8x16xf32, #tpu.memory_space<vmem>>, vector<1x1x1x8x16xf32>
    %74 = vector.shape_cast %73 : vector<1x1x1x8x16xf32> to vector<8x16xf32>
    %75 = arith.addf %72, %74 : vector<8x16xf32>
    %76 = vector.broadcast %38 : f32 to vector<8x16xf32>
    %77 = arith.mulf %75, %76 : vector<8x16xf32>
    %c0_70 = arith.constant 0 : index
    %c5 = arith.constant 5 : index
    %c1_71 = arith.constant 1 : index
    %c0_72 = arith.constant 0 : index
    %78 = vector.load %arg13[%c0_70, %c5, %c1_71, %c0_72] : memref<2x6x10x16xf32, #tpu.memory_space<vmem>>, vector<1x1x8x16xf32>
    %79 = vector.shape_cast %78 : vector<1x1x8x16xf32> to vector<8x16xf32>
    %80 = vector.shape_cast %77 : vector<8x16xf32> to vector<1x1x8x16xf32>
    tpu.vector_store %arg13[%c0_70, %c5, %c1_71, %c0_72], %80 {strides = array<i32>} : memref<2x6x10x16xf32, #tpu.memory_space<vmem>>, vector<1x1x8x16xf32>,
    %c1_73 = arith.constant 1 : index
    %c0_74 = arith.constant 0 : index
    %c0_75 = arith.constant 0 : index
    %c0_76 = arith.constant 0 : index
    %81 = vector.load %arg13[%c1_73, %c0_74, %c0_75, %c0_76] : memref<2x6x10x16xf32, #tpu.memory_space<vmem>>, vector<1x4x8x16xf32>
    %82 = vector.shape_cast %81 : vector<1x4x8x16xf32> to vector<4x8x16xf32>
    %83 = arith.truncf %82 : vector<4x8x16xf32> to vector<4x8x16xbf16>
    %c0_77 = arith.constant 0 : index
    %c0_78 = arith.constant 0 : index
    %c0_79 = arith.constant 0 : index
    %84 = vector.load %arg14[%c0_77, %c0_78, %c0_79] : memref<4x8x144xbf16, #tpu.memory_space<vmem>>, vector<4x8x16xbf16>
    tpu.vector_store %arg14[%c0_77, %c0_78, %c0_79], %83 {strides = array<i32>} : memref<4x8x144xbf16, #tpu.memory_space<vmem>>, vector<4x8x16xbf16>,
    %c1_80 = arith.constant 1 : index
    %c0_81 = arith.constant 0 : index
    %c1_82 = arith.constant 1 : index
    %c0_83 = arith.constant 0 : index
    %85 = vector.load %arg13[%c1_80, %c0_81, %c1_82, %c0_83] : memref<2x6x10x16xf32, #tpu.memory_space<vmem>>, vector<1x4x8x16xf32>
    %86 = vector.shape_cast %85 : vector<1x4x8x16xf32> to vector<4x8x16xf32>
    %87 = arith.truncf %86 : vector<4x8x16xf32> to vector<4x8x16xbf16>
    %c0_84 = arith.constant 0 : index
    %c0_85 = arith.constant 0 : index
    %c16_86 = arith.constant 16 : index
    %88 = vector.load %arg14[%c0_84, %c0_85, %c16_86] : memref<4x8x144xbf16, #tpu.memory_space<vmem>>, vector<4x8x16xbf16>
    tpu.vector_store %arg14[%c0_84, %c0_85, %c16_86], %87 {strides = array<i32>} : memref<4x8x144xbf16, #tpu.memory_space<vmem>>, vector<4x8x16xbf16>,
    %c1_87 = arith.constant 1 : index
    %c0_88 = arith.constant 0 : index
    %c2 = arith.constant 2 : index
    %c0_89 = arith.constant 0 : index
    %89 = vector.load %arg13[%c1_87, %c0_88, %c2, %c0_89] : memref<2x6x10x16xf32, #tpu.memory_space<vmem>>, vector<1x4x8x16xf32>
    %90 = vector.shape_cast %89 : vector<1x4x8x16xf32> to vector<4x8x16xf32>
    %91 = arith.truncf %90 : vector<4x8x16xf32> to vector<4x8x16xbf16>
    %c0_90 = arith.constant 0 : index
    %c0_91 = arith.constant 0 : index
    %c32 = arith.constant 32 : index
    %92 = vector.load %arg14[%c0_90, %c0_91, %c32] : memref<4x8x144xbf16, #tpu.memory_space<vmem>>, vector<4x8x16xbf16>
    tpu.vector_store %arg14[%c0_90, %c0_91, %c32], %91 {strides = array<i32>} : memref<4x8x144xbf16, #tpu.memory_space<vmem>>, vector<4x8x16xbf16>,
    %c0_92 = arith.constant 0 : index
    %c1_93 = arith.constant 1 : index
    %c0_94 = arith.constant 0 : index
    %c0_95 = arith.constant 0 : index
    %93 = vector.load %arg13[%c0_92, %c1_93, %c0_94, %c0_95] : memref<2x6x10x16xf32, #tpu.memory_space<vmem>>, vector<1x4x8x16xf32>
    %94 = vector.shape_cast %93 : vector<1x4x8x16xf32> to vector<4x8x16xf32>
    %95 = arith.truncf %94 : vector<4x8x16xf32> to vector<4x8x16xbf16>
    %c0_96 = arith.constant 0 : index
    %c0_97 = arith.constant 0 : index
    %c48 = arith.constant 48 : index
    %96 = vector.load %arg14[%c0_96, %c0_97, %c48] : memref<4x8x144xbf16, #tpu.memory_space<vmem>>, vector<4x8x16xbf16>
    tpu.vector_store %arg14[%c0_96, %c0_97, %c48], %95 {strides = array<i32>} : memref<4x8x144xbf16, #tpu.memory_space<vmem>>, vector<4x8x16xbf16>,
    %c0_98 = arith.constant 0 : index
    %c1_99 = arith.constant 1 : index
    %c1_100 = arith.constant 1 : index
    %c0_101 = arith.constant 0 : index
    %97 = vector.load %arg13[%c0_98, %c1_99, %c1_100, %c0_101] : memref<2x6x10x16xf32, #tpu.memory_space<vmem>>, vector<1x4x8x16xf32>
    %98 = vector.shape_cast %97 : vector<1x4x8x16xf32> to vector<4x8x16xf32>
    %99 = arith.truncf %98 : vector<4x8x16xf32> to vector<4x8x16xbf16>
    %c0_102 = arith.constant 0 : index
    %c0_103 = arith.constant 0 : index
    %c64 = arith.constant 64 : index
    %100 = vector.load %arg14[%c0_102, %c0_103, %c64] : memref<4x8x144xbf16, #tpu.memory_space<vmem>>, vector<4x8x16xbf16>
    tpu.vector_store %arg14[%c0_102, %c0_103, %c64], %99 {strides = array<i32>} : memref<4x8x144xbf16, #tpu.memory_space<vmem>>, vector<4x8x16xbf16>,
    %c0_104 = arith.constant 0 : index
    %c1_105 = arith.constant 1 : index
    %c2_106 = arith.constant 2 : index
    %c0_107 = arith.constant 0 : index
    %101 = vector.load %arg13[%c0_104, %c1_105, %c2_106, %c0_107] : memref<2x6x10x16xf32, #tpu.memory_space<vmem>>, vector<1x4x8x16xf32>
    %102 = vector.shape_cast %101 : vector<1x4x8x16xf32> to vector<4x8x16xf32>
    %103 = arith.truncf %102 : vector<4x8x16xf32> to vector<4x8x16xbf16>
    %c0_108 = arith.constant 0 : index
    %c0_109 = arith.constant 0 : index
    %c80 = arith.constant 80 : index
    %104 = vector.load %arg14[%c0_108, %c0_109, %c80] : memref<4x8x144xbf16, #tpu.memory_space<vmem>>, vector<4x8x16xbf16>
    tpu.vector_store %arg14[%c0_108, %c0_109, %c80], %103 {strides = array<i32>} : memref<4x8x144xbf16, #tpu.memory_space<vmem>>, vector<4x8x16xbf16>,
    %c1_110 = arith.constant 1 : index
    %c1_111 = arith.constant 1 : index
    %c0_112 = arith.constant 0 : index
    %c0_113 = arith.constant 0 : index
    %105 = vector.load %arg13[%c1_110, %c1_111, %c0_112, %c0_113] : memref<2x6x10x16xf32, #tpu.memory_space<vmem>>, vector<1x4x8x16xf32>
    %106 = vector.shape_cast %105 : vector<1x4x8x16xf32> to vector<4x8x16xf32>
    %107 = arith.truncf %106 : vector<4x8x16xf32> to vector<4x8x16xbf16>
    %c0_114 = arith.constant 0 : index
    %c0_115 = arith.constant 0 : index
    %c96 = arith.constant 96 : index
    %108 = vector.load %arg14[%c0_114, %c0_115, %c96] : memref<4x8x144xbf16, #tpu.memory_space<vmem>>, vector<4x8x16xbf16>
    tpu.vector_store %arg14[%c0_114, %c0_115, %c96], %107 {strides = array<i32>} : memref<4x8x144xbf16, #tpu.memory_space<vmem>>, vector<4x8x16xbf16>,
    %c1_116 = arith.constant 1 : index
    %c1_117 = arith.constant 1 : index
    %c1_118 = arith.constant 1 : index
    %c0_119 = arith.constant 0 : index
    %109 = vector.load %arg13[%c1_116, %c1_117, %c1_118, %c0_119] : memref<2x6x10x16xf32, #tpu.memory_space<vmem>>, vector<1x4x8x16xf32>
    %110 = vector.shape_cast %109 : vector<1x4x8x16xf32> to vector<4x8x16xf32>
    %111 = arith.truncf %110 : vector<4x8x16xf32> to vector<4x8x16xbf16>
    %c0_120 = arith.constant 0 : index
    %c0_121 = arith.constant 0 : index
    %c112 = arith.constant 112 : index
    %112 = vector.load %arg14[%c0_120, %c0_121, %c112] : memref<4x8x144xbf16, #tpu.memory_space<vmem>>, vector<4x8x16xbf16>
    tpu.vector_store %arg14[%c0_120, %c0_121, %c112], %111 {strides = array<i32>} : memref<4x8x144xbf16, #tpu.memory_space<vmem>>, vector<4x8x16xbf16>,
    %c1_122 = arith.constant 1 : index
    %c1_123 = arith.constant 1 : index
    %c2_124 = arith.constant 2 : index
    %c0_125 = arith.constant 0 : index
    %113 = vector.load %arg13[%c1_122, %c1_123, %c2_124, %c0_125] : memref<2x6x10x16xf32, #tpu.memory_space<vmem>>, vector<1x4x8x16xf32>
    %114 = vector.shape_cast %113 : vector<1x4x8x16xf32> to vector<4x8x16xf32>
    %115 = arith.truncf %114 : vector<4x8x16xf32> to vector<4x8x16xbf16>
    %c0_126 = arith.constant 0 : index
    %c0_127 = arith.constant 0 : index
    %c128 = arith.constant 128 : index
    %116 = vector.load %arg14[%c0_126, %c0_127, %c128] : memref<4x8x144xbf16, #tpu.memory_space<vmem>>, vector<4x8x16xbf16>
    tpu.vector_store %arg14[%c0_126, %c0_127, %c128], %115 {strides = array<i32>} : memref<4x8x144xbf16, #tpu.memory_space<vmem>>, vector<4x8x16xbf16>,
    %c0_128 = arith.constant 0 : index
    %c0_129 = arith.constant 0 : index
    %c0_130 = arith.constant 0 : index
    %117 = vector.load %arg14[%c0_128, %c0_129, %c0_130] : memref<4x8x144xbf16, #tpu.memory_space<vmem>>, vector<4x8x144xbf16>
    %118 = vector.shape_cast %117 : vector<4x8x144xbf16> to vector<32x144xbf16>
    %c0_131 = arith.constant 0 : index
    %c0_132 = arith.constant 0 : index
    %119 = vector.load %arg10[%c0_131, %c0_132] : memref<144x16xbf16, #tpu.memory_space<vmem>>, vector<144x16xbf16>
    %cst_133 = arith.constant dense<0.000000e+00> : vector<32x16xf32>
    %120 = tpu.matmul %118, %119, %cst_133 {dimension_numbers = #tpu.dot_dimension_numbers<[1], [0], [0], [1], [0, 0, 1, 1], [], []>} : vector<32x144xbf16>, vector<144x16xbf16>, vector<32x16xf32> -> vector<32x16xf32>
    %c0_134 = arith.constant 0 : index
    %c0_135 = arith.constant 0 : index
    %121 = vector.load %arg11[%c0_134, %c0_135] : memref<1x16xf32, #tpu.memory_space<vmem>>, vector<1x16xf32>
    %122 = vector.broadcast %121 : vector<1x16xf32> to vector<32x16xf32>
    %123 = arith.addf %120, %122 : vector<32x16xf32>
    %cst_136 = arith.constant 0.000000e+00 : f32
    %124 = vector.broadcast %cst_136 : f32 to vector<32x16xf32>
    %125 = arith.cmpf ogt, %123, %124 : vector<32x16xf32>
    %cst_137 = arith.constant 0.00999999977 : f32
    %126 = vector.broadcast %cst_137 : f32 to vector<32x16xf32>
    %127 = arith.mulf %126, %123 : vector<32x16xf32>
    %128 = arith.select %125, %123, %127 : vector<32x16xi1>, vector<32x16xf32>
    %129 = vector.shape_cast %128 : vector<32x16xf32> to vector<4x8x16xf32>
    %c0_138 = arith.constant 0 : index
    %c0_139 = arith.constant 0 : index
    %c0_140 = arith.constant 0 : index
    %c0_141 = arith.constant 0 : index
    %c0_142 = arith.constant 0 : index
    %130 = vector.load %arg12[%c0_138, %c0_139, %c0_140, %c0_141, %c0_142] : memref<1x4x2x8x16xf32, #tpu.memory_space<vmem>>, vector<1x4x1x8x16xf32>
    %131 = vector.shape_cast %130 : vector<1x4x1x8x16xf32> to vector<4x8x16xf32>
    %132 = vector.shape_cast %129 : vector<4x8x16xf32> to vector<1x4x1x8x16xf32>
    tpu.vector_store %arg12[%c0_138, %c0_139, %c0_140, %c0_141, %c0_142], %132 {strides = array<i32>} : memref<1x4x2x8x16xf32, #tpu.memory_space<vmem>>, vector<1x4x1x8x16xf32>,
    %c0_143 = arith.constant 0 : index
    %c1_144 = arith.constant 1 : index
    %c0_145 = arith.constant 0 : index
    %c0_146 = arith.constant 0 : index
    %133 = vector.load %arg13[%c0_143, %c1_144, %c0_145, %c0_146] : memref<2x6x10x16xf32, #tpu.memory_space<vmem>>, vector<1x4x8x16xf32>
    %134 = vector.shape_cast %133 : vector<1x4x8x16xf32> to vector<4x8x16xf32>
    %135 = arith.truncf %134 : vector<4x8x16xf32> to vector<4x8x16xbf16>
    %c0_147 = arith.constant 0 : index
    %c0_148 = arith.constant 0 : index
    %c0_149 = arith.constant 0 : index
    %136 = vector.load %arg14[%c0_147, %c0_148, %c0_149] : memref<4x8x144xbf16, #tpu.memory_space<vmem>>, vector<4x8x16xbf16>
    tpu.vector_store %arg14[%c0_147, %c0_148, %c0_149], %135 {strides = array<i32>} : memref<4x8x144xbf16, #tpu.memory_space<vmem>>, vector<4x8x16xbf16>,
    %c0_150 = arith.constant 0 : index
    %c1_151 = arith.constant 1 : index
    %c1_152 = arith.constant 1 : index
    %c0_153 = arith.constant 0 : index
    %137 = vector.load %arg13[%c0_150, %c1_151, %c1_152, %c0_153] : memref<2x6x10x16xf32, #tpu.memory_space<vmem>>, vector<1x4x8x16xf32>
    %138 = vector.shape_cast %137 : vector<1x4x8x16xf32> to vector<4x8x16xf32>
    %139 = arith.truncf %138 : vector<4x8x16xf32> to vector<4x8x16xbf16>
    %c0_154 = arith.constant 0 : index
    %c0_155 = arith.constant 0 : index
    %c16_156 = arith.constant 16 : index
    %140 = vector.load %arg14[%c0_154, %c0_155, %c16_156] : memref<4x8x144xbf16, #tpu.memory_space<vmem>>, vector<4x8x16xbf16>
    tpu.vector_store %arg14[%c0_154, %c0_155, %c16_156], %139 {strides = array<i32>} : memref<4x8x144xbf16, #tpu.memory_space<vmem>>, vector<4x8x16xbf16>,
    %c0_157 = arith.constant 0 : index
    %c1_158 = arith.constant 1 : index
    %c2_159 = arith.constant 2 : index
    %c0_160 = arith.constant 0 : index
    %141 = vector.load %arg13[%c0_157, %c1_158, %c2_159, %c0_160] : memref<2x6x10x16xf32, #tpu.memory_space<vmem>>, vector<1x4x8x16xf32>
    %142 = vector.shape_cast %141 : vector<1x4x8x16xf32> to vector<4x8x16xf32>
    %143 = arith.truncf %142 : vector<4x8x16xf32> to vector<4x8x16xbf16>
    %c0_161 = arith.constant 0 : index
    %c0_162 = arith.constant 0 : index
    %c32_163 = arith.constant 32 : index
    %144 = vector.load %arg14[%c0_161, %c0_162, %c32_163] : memref<4x8x144xbf16, #tpu.memory_space<vmem>>, vector<4x8x16xbf16>
    tpu.vector_store %arg14[%c0_161, %c0_162, %c32_163], %143 {strides = array<i32>} : memref<4x8x144xbf16, #tpu.memory_space<vmem>>, vector<4x8x16xbf16>,
    %c1_164 = arith.constant 1 : index
    %c1_165 = arith.constant 1 : index
    %c0_166 = arith.constant 0 : index
    %c0_167 = arith.constant 0 : index
    %145 = vector.load %arg13[%c1_164, %c1_165, %c0_166, %c0_167] : memref<2x6x10x16xf32, #tpu.memory_space<vmem>>, vector<1x4x8x16xf32>
    %146 = vector.shape_cast %145 : vector<1x4x8x16xf32> to vector<4x8x16xf32>
    %147 = arith.truncf %146 : vector<4x8x16xf32> to vector<4x8x16xbf16>
    %c0_168 = arith.constant 0 : index
    %c0_169 = arith.constant 0 : index
    %c48_170 = arith.constant 48 : index
    %148 = vector.load %arg14[%c0_168, %c0_169, %c48_170] : memref<4x8x144xbf16, #tpu.memory_space<vmem>>, vector<4x8x16xbf16>
    tpu.vector_store %arg14[%c0_168, %c0_169, %c48_170], %147 {strides = array<i32>} : memref<4x8x144xbf16, #tpu.memory_space<vmem>>, vector<4x8x16xbf16>,
    %c1_171 = arith.constant 1 : index
    %c1_172 = arith.constant 1 : index
    %c1_173 = arith.constant 1 : index
    %c0_174 = arith.constant 0 : index
    %149 = vector.load %arg13[%c1_171, %c1_172, %c1_173, %c0_174] : memref<2x6x10x16xf32, #tpu.memory_space<vmem>>, vector<1x4x8x16xf32>
    %150 = vector.shape_cast %149 : vector<1x4x8x16xf32> to vector<4x8x16xf32>
    %151 = arith.truncf %150 : vector<4x8x16xf32> to vector<4x8x16xbf16>
    %c0_175 = arith.constant 0 : index
    %c0_176 = arith.constant 0 : index
    %c64_177 = arith.constant 64 : index
    %152 = vector.load %arg14[%c0_175, %c0_176, %c64_177] : memref<4x8x144xbf16, #tpu.memory_space<vmem>>, vector<4x8x16xbf16>
    tpu.vector_store %arg14[%c0_175, %c0_176, %c64_177], %151 {strides = array<i32>} : memref<4x8x144xbf16, #tpu.memory_space<vmem>>, vector<4x8x16xbf16>,
    %c1_178 = arith.constant 1 : index
    %c1_179 = arith.constant 1 : index
    %c2_180 = arith.constant 2 : index
    %c0_181 = arith.constant 0 : index
    %153 = vector.load %arg13[%c1_178, %c1_179, %c2_180, %c0_181] : memref<2x6x10x16xf32, #tpu.memory_space<vmem>>, vector<1x4x8x16xf32>
    %154 = vector.shape_cast %153 : vector<1x4x8x16xf32> to vector<4x8x16xf32>
    %155 = arith.truncf %154 : vector<4x8x16xf32> to vector<4x8x16xbf16>
    %c0_182 = arith.constant 0 : index
    %c0_183 = arith.constant 0 : index
    %c80_184 = arith.constant 80 : index
    %156 = vector.load %arg14[%c0_182, %c0_183, %c80_184] : memref<4x8x144xbf16, #tpu.memory_space<vmem>>, vector<4x8x16xbf16>
    tpu.vector_store %arg14[%c0_182, %c0_183, %c80_184], %155 {strides = array<i32>} : memref<4x8x144xbf16, #tpu.memory_space<vmem>>, vector<4x8x16xbf16>,
    %c0_185 = arith.constant 0 : index
    %c2_186 = arith.constant 2 : index
    %c0_187 = arith.constant 0 : index
    %c0_188 = arith.constant 0 : index
    %157 = vector.load %arg13[%c0_185, %c2_186, %c0_187, %c0_188] : memref<2x6x10x16xf32, #tpu.memory_space<vmem>>, vector<1x4x8x16xf32>
    %158 = vector.shape_cast %157 : vector<1x4x8x16xf32> to vector<4x8x16xf32>
    %159 = arith.truncf %158 : vector<4x8x16xf32> to vector<4x8x16xbf16>
    %c0_189 = arith.constant 0 : index
    %c0_190 = arith.constant 0 : index
    %c96_191 = arith.constant 96 : index
    %160 = vector.load %arg14[%c0_189, %c0_190, %c96_191] : memref<4x8x144xbf16, #tpu.memory_space<vmem>>, vector<4x8x16xbf16>
    tpu.vector_store %arg14[%c0_189, %c0_190, %c96_191], %159 {strides = array<i32>} : memref<4x8x144xbf16, #tpu.memory_space<vmem>>, vector<4x8x16xbf16>,
    %c0_192 = arith.constant 0 : index
    %c2_193 = arith.constant 2 : index
    %c1_194 = arith.constant 1 : index
    %c0_195 = arith.constant 0 : index
    %161 = vector.load %arg13[%c0_192, %c2_193, %c1_194, %c0_195] : memref<2x6x10x16xf32, #tpu.memory_space<vmem>>, vector<1x4x8x16xf32>
    %162 = vector.shape_cast %161 : vector<1x4x8x16xf32> to vector<4x8x16xf32>
    %163 = arith.truncf %162 : vector<4x8x16xf32> to vector<4x8x16xbf16>
    %c0_196 = arith.constant 0 : index
    %c0_197 = arith.constant 0 : index
    %c112_198 = arith.constant 112 : index
    %164 = vector.load %arg14[%c0_196, %c0_197, %c112_198] : memref<4x8x144xbf16, #tpu.memory_space<vmem>>, vector<4x8x16xbf16>
    tpu.vector_store %arg14[%c0_196, %c0_197, %c112_198], %163 {strides = array<i32>} : memref<4x8x144xbf16, #tpu.memory_space<vmem>>, vector<4x8x16xbf16>,
    %c0_199 = arith.constant 0 : index
    %c2_200 = arith.constant 2 : index
    %c2_201 = arith.constant 2 : index
    %c0_202 = arith.constant 0 : index
    %165 = vector.load %arg13[%c0_199, %c2_200, %c2_201, %c0_202] : memref<2x6x10x16xf32, #tpu.memory_space<vmem>>, vector<1x4x8x16xf32>
    %166 = vector.shape_cast %165 : vector<1x4x8x16xf32> to vector<4x8x16xf32>
    %167 = arith.truncf %166 : vector<4x8x16xf32> to vector<4x8x16xbf16>
    %c0_203 = arith.constant 0 : index
    %c0_204 = arith.constant 0 : index
    %c128_205 = arith.constant 128 : index
    %168 = vector.load %arg14[%c0_203, %c0_204, %c128_205] : memref<4x8x144xbf16, #tpu.memory_space<vmem>>, vector<4x8x16xbf16>
    tpu.vector_store %arg14[%c0_203, %c0_204, %c128_205], %167 {strides = array<i32>} : memref<4x8x144xbf16, #tpu.memory_space<vmem>>, vector<4x8x16xbf16>,
    %c0_206 = arith.constant 0 : index
    %c0_207 = arith.constant 0 : index
    %c0_208 = arith.constant 0 : index
    %169 = vector.load %arg14[%c0_206, %c0_207, %c0_208] : memref<4x8x144xbf16, #tpu.memory_space<vmem>>, vector<4x8x144xbf16>
    %170 = vector.shape_cast %169 : vector<4x8x144xbf16> to vector<32x144xbf16>
    %c0_209 = arith.constant 0 : index
    %c0_210 = arith.constant 0 : index
    %171 = vector.load %arg10[%c0_209, %c0_210] : memref<144x16xbf16, #tpu.memory_space<vmem>>, vector<144x16xbf16>
    %cst_211 = arith.constant dense<0.000000e+00> : vector<32x16xf32>
    %172 = tpu.matmul %170, %171, %cst_211 {dimension_numbers = #tpu.dot_dimension_numbers<[1], [0], [0], [1], [0, 0, 1, 1], [], []>} : vector<32x144xbf16>, vector<144x16xbf16>, vector<32x16xf32> -> vector<32x16xf32>
    %c0_212 = arith.constant 0 : index
    %c0_213 = arith.constant 0 : index
    %173 = vector.load %arg11[%c0_212, %c0_213] : memref<1x16xf32, #tpu.memory_space<vmem>>, vector<1x16xf32>
    %174 = vector.broadcast %173 : vector<1x16xf32> to vector<32x16xf32>
    %175 = arith.addf %172, %174 : vector<32x16xf32>
    %cst_214 = arith.constant 0.000000e+00 : f32
    %176 = vector.broadcast %cst_214 : f32 to vector<32x16xf32>
    %177 = arith.cmpf ogt, %175, %176 : vector<32x16xf32>
    %cst_215 = arith.constant 0.00999999977 : f32
    %178 = vector.broadcast %cst_215 : f32 to vector<32x16xf32>
    %179 = arith.mulf %178, %175 : vector<32x16xf32>
    %180 = arith.select %177, %175, %179 : vector<32x16xi1>, vector<32x16xf32>
    %181 = vector.shape_cast %180 : vector<32x16xf32> to vector<4x8x16xf32>
    %c0_216 = arith.constant 0 : index
    %c0_217 = arith.constant 0 : index
    %c1_218 = arith.constant 1 : index
    %c0_219 = arith.constant 0 : index
    %c0_220 = arith.constant 0 : index
    %182 = vector.load %arg12[%c0_216, %c0_217, %c1_218, %c0_219, %c0_220] : memref<1x4x2x8x16xf32, #tpu.memory_space<vmem>>, vector<1x4x1x8x16xf32>
    %183 = vector.shape_cast %182 : vector<1x4x1x8x16xf32> to vector<4x8x16xf32>
    %184 = vector.shape_cast %181 : vector<4x8x16xf32> to vector<1x4x1x8x16xf32>
    tpu.vector_store %arg12[%c0_216, %c0_217, %c1_218, %c0_219, %c0_220], %184 {strides = array<i32>} : memref<1x4x2x8x16xf32, #tpu.memory_space<vmem>>, vector<1x4x1x8x16xf32>,
    return
  }
  func.func @transform_0(%arg0: i32, %arg1: i32) -> (i32, i32, i32, i32) {
    %c0_i32 = arith.constant 0 : i32
    %c0_i32_0 = arith.constant 0 : i32
    %c0_i32_1 = arith.constant 0 : i32
    return %arg0, %arg1, %c0_i32, %c0_i32_0 : i32, i32, i32, i32
  }
  func.func @transform_1(%arg0: i32, %arg1: i32) -> (i32, i32, i32, i32) {
    %c4_i32 = arith.constant 4 : i32
    %0 = arith.muli %arg1, %c4_i32 : i32
    %c1_i32 = arith.constant 1 : i32
    %1 = arith.subi %0, %c1_i32 : i32
    %c0_i32 = arith.constant 0 : i32
    %2 = arith.maxsi %1, %c0_i32 : i32
    %c0_i32_0 = arith.constant 0 : i32
    %c0_i32_1 = arith.constant 0 : i32
    %c0_i32_2 = arith.constant 0 : i32
    return %arg0, %2, %c0_i32_0, %c0_i32_1 : i32, i32, i32, i32
  }
  func.func @transform_2(%arg0: i32, %arg1: i32) -> (i32, i32, i32, i32) {
    %c4_i32 = arith.constant 4 : i32
    %0 = arith.muli %arg1, %c4_i32 : i32
    %c4_i32_0 = arith.constant 4 : i32
    %1 = arith.addi %0, %c4_i32_0 : i32
    %c7_i32 = arith.constant 7 : i32
    %2 = arith.minsi %1, %c7_i32 : i32
    %c0_i32 = arith.constant 0 : i32
    %c0_i32_1 = arith.constant 0 : i32
    %c0_i32_2 = arith.constant 0 : i32
    return %arg0, %2, %c0_i32, %c0_i32_1 : i32, i32, i32, i32
  }
  func.func @transform_3(%arg0: i32, %arg1: i32) -> (i32, i32, i32, i32, i32) {
    %c0_i32 = arith.constant 0 : i32
    %c0_i32_0 = arith.constant 0 : i32
    %c0_i32_1 = arith.constant 0 : i32
    %c0_i32_2 = arith.constant 0 : i32
    return %arg0, %arg1, %c0_i32, %c0_i32_0, %c0_i32_1 : i32, i32, i32, i32, i32
  }
  func.func @transform_4(%arg0: i32, %arg1: i32) -> (i32, i32, i32, i32, i32) {
    %c4_i32 = arith.constant 4 : i32
    %0 = arith.muli %arg1, %c4_i32 : i32
    %c1_i32 = arith.constant 1 : i32
    %1 = arith.subi %0, %c1_i32 : i32
    %c0_i32 = arith.constant 0 : i32
    %2 = arith.maxsi %1, %c0_i32 : i32
    %c0_i32_0 = arith.constant 0 : i32
    %c0_i32_1 = arith.constant 0 : i32
    %c0_i32_2 = arith.constant 0 : i32
    %c0_i32_3 = arith.constant 0 : i32
    return %arg0, %2, %c0_i32_0, %c0_i32_1, %c0_i32_2 : i32, i32, i32, i32, i32
  }
  func.func @transform_5(%arg0: i32, %arg1: i32) -> (i32, i32, i32, i32, i32) {
    %c4_i32 = arith.constant 4 : i32
    %0 = arith.muli %arg1, %c4_i32 : i32
    %c4_i32_0 = arith.constant 4 : i32
    %1 = arith.addi %0, %c4_i32_0 : i32
    %c7_i32 = arith.constant 7 : i32
    %2 = arith.minsi %1, %c7_i32 : i32
    %c0_i32 = arith.constant 0 : i32
    %c0_i32_1 = arith.constant 0 : i32
    %c0_i32_2 = arith.constant 0 : i32
    %c0_i32_3 = arith.constant 0 : i32
    return %arg0, %2, %c0_i32, %c0_i32_1, %c0_i32_2 : i32, i32, i32, i32, i32
  }
  func.func @transform_6(%arg0: i32, %arg1: i32) -> (i32, i32) {
    %c0_i32 = arith.constant 0 : i32
    %c0_i32_0 = arith.constant 0 : i32
    %c0_i32_1 = arith.constant 0 : i32
    return %c0_i32, %c0_i32_0 : i32, i32
  }
  func.func @transform_7(%arg0: i32, %arg1: i32) -> (i32, i32) {
    %c0_i32 = arith.constant 0 : i32
    %c0_i32_0 = arith.constant 0 : i32
    %c0_i32_1 = arith.constant 0 : i32
    return %c0_i32, %c0_i32_0 : i32, i32
  }
  func.func @transform_8(%arg0: i32, %arg1: i32) -> (i32, i32) {
    %c0_i32 = arith.constant 0 : i32
    %c0_i32_0 = arith.constant 0 : i32
    %c0_i32_1 = arith.constant 0 : i32
    return %c0_i32, %c0_i32_0 : i32, i32
  }
  func.func @transform_9(%arg0: i32, %arg1: i32) -> (i32, i32) {
    %c0_i32 = arith.constant 0 : i32
    %c0_i32_0 = arith.constant 0 : i32
    %c0_i32_1 = arith.constant 0 : i32
    return %c0_i32, %c0_i32_0 : i32, i32
  }
  func.func @transform_10(%arg0: i32, %arg1: i32) -> (i32, i32, i32, i32, i32) {
    %c0_i32 = arith.constant 0 : i32
    %c0_i32_0 = arith.constant 0 : i32
    %c0_i32_1 = arith.constant 0 : i32
    %c0_i32_2 = arith.constant 0 : i32
    return %arg0, %arg1, %c0_i32, %c0_i32_0, %c0_i32_1 : i32, i32, i32, i32, i32
  }
}

</mosaic_0001>

<llo_original>
// kernel: up_forward.1
$region0: #{up_forward.1}
  #allocation0 [shape = 'u32[]', space=smem, size = 0x4, offset = 0x4, fixed_abs, tag = 'smem constant byte address 0x4 - core index']
  #allocation1 [shape = 'u32[144,128]{1,0:T(1,128)}', space=vmem, size = 0x12000, scoped, tag = 'internal scratch']
  #allocation2 [shape = 'f32[2,6,10,16]{3,2,1,0:T(8,128)}', space=vmem, size = 0x18000, scoped, tag = 'scratch operand']
  #allocation3 [shape = 'bf16[4,8,144]{2,1,0:T(8,128)(2,1)}', space=vmem, size = 0x4000, scoped, tag = 'scratch operand']
  %s0 = inlined_call_operand.vmem [shape: f32[2,8,8,8], index: 0, kind: input, shape index: {}, may-alias: {0,1,2}]
  %s1 = inlined_call_operand.vmem [shape: f32[2,8,8,8], index: 1, kind: input, shape index: {}, may-alias: {0,1,2}]
  %s2 = inlined_call_operand.vmem [shape: f32[2,8,8,8], index: 2, kind: input, shape index: {}, may-alias: {0,1,2}]
  %s3 = inlined_call_operand.vmem [shape: f32[2,8,2,8,16], index: 3, kind: input, shape index: {}, may-alias: {3,4,5}]
  %s4 = inlined_call_operand.vmem [shape: f32[2,8,2,8,16], index: 4, kind: input, shape index: {}, may-alias: {3,4,5}]
  %s5 = inlined_call_operand.vmem [shape: f32[2,8,2,8,16], index: 5, kind: input, shape index: {}, may-alias: {3,4,5}]
  %s6 = inlined_call_operand.vmem [shape: bf16[8,32], index: 6, kind: input, shape index: {}]
  %s7 = inlined_call_operand.vmem [shape: f32[1,32], index: 7, kind: input, shape index: {}]
  %s8 = inlined_call_operand.vmem [shape: bf16[144,16], index: 8, kind: input, shape index: {}]
  %s9 = inlined_call_operand.vmem [shape: f32[1,16], index: 9, kind: input, shape index: {}]
  %s10 = inlined_call_operand.vmem [shape: f32[2,8,2,8,16], index: 10, kind: output, shape index: {}]
  %s11 = sld [smem:[#allocation0]]
  $region73: #{up_forward.1} parent=0
    _
  %s13 = ssub.s32 1, %s11
  %s14 = scalar_select 0, %s13, %s11
  loop: start=0, step=1, limit=6
  $region2: #{up_forward.1} parent=0 // loop_pre_header
    _
  $region3: #{up_forward.1} parent=0 // loop_header
    %s16 = sphi 0, %s20
    %p17 = scmp.ge.s32.totalorder %s16, 6
    %s23 = sphi 0, %s35
    %s24 = sphi 0, %s31
    %s25 = sphi 0, %s23
    %s26 = sphi 0, %s24
    %s27 = sphi 0, %s25
    %s28 = sphi 0, %s26
    %s40 = sphi 0, %s42
    %s43 = sphi 0, %s40
    %s44 = sphi 0, %s43
    %s60 = sphi 0, %s44
    %s76 = sphi 0, %s78
    %s79 = sphi 0, %s76
    %s80 = sphi 0, %s79
    %s96 = sphi 0, %s80
    %s112 = sphi 0, %s114
    %s115 = sphi 0, %s112
    %s116 = sphi 0, %s115
    %s132 = sphi 0, %s116
    %s140 = sphi 0, %s142
    %s143 = sphi 0, %s140
    %s144 = sphi 0, %s143
    %s160 = sphi 0, %s144
    %s176 = sphi 0, %s178
    %s179 = sphi 0, %s176
    %s180 = sphi 0, %s179
    %s196 = sphi 0, %s180
    %s212 = sphi 0, %s214
    %s215 = sphi 0, %s212
    %s216 = sphi 0, %s215
    %s232 = sphi 0, %s216
    %s236 = sphi 0, %s236
    %s238 = sphi 0, %s236
    %s239 = sphi 0, %s238
    %s253 = sphi 0, %s239
    %s257 = sphi 0, %s257
    %s259 = sphi 0, %s257
    %s260 = sphi 0, %s259
    %s274 = sphi 0, %s260
    %s278 = sphi 0, %s278
    %s280 = sphi 0, %s278
    %s281 = sphi 0, %s280
    %s295 = sphi 0, %s281
    %s299 = sphi 0, %s299
    %s301 = sphi 0, %s299
    %s302 = sphi 0, %s301
    %s316 = sphi 0, %s302
    %s324 = sphi 0, %s326
    %s327 = sphi 0, %s324
    %s328 = sphi 0, %s327
    %s344 = sphi 0, %s328
  $region4: #{up_forward.1} parent=0 // loop_header_branch
    %19 = sbr.rel (%p17) target = $region8
  $region5: #{up_forward.1} parent=0 // loop_body
    %s21 = ssub.s32 %s16, 1
    %s22 = ssub.s32 %s16, 2
    %s29 = sadd.s32 1, %s24
    %p30 = scmp.ge.s32.totalorder %s29, 2
    %s31 = scalar_select %p30, 0, %s29
    %s32 = sadd.s32 1, %s23
    %s33 = scalar_select %p30, %s32, %s23
    %p34 = scmp.ge.s32.totalorder %s33, 2
    %s35 = scalar_select %p34, 0, %s33
    %s36 = ssub.s32 %s23, %s35
    %s37 = ssub.s32 %s24, %s31
    %s38 = sor.u32 %s36, %s37
    %p39 = scmp.eq.s32.totalorder %s38, 0
    %s41 = sadd.s32 %s40, 1
    %s42 = scalar_select %p39, %s40, %s41
    %p45 = pneg %p39
    %p46 = scmp.eq.s32.totalorder %s16, 3
    %p47 = por %p45, %p46
    %p48 = scmp.ne.s32.totalorder %s40, %s43
    %p49 = scmp.eq.s32.totalorder %s16, 0
    %p50 = por %p48, %p49
    %p51 = scmp.ne.s32.totalorder %s40, %s43
    %p52 = scmp.eq.s32.totalorder %s21, 3
    %p53 = por %p51, %p52
    %p54 = scmp.ne.s32.totalorder %s43, %s44
    %p55 = scmp.eq.s32.totalorder %s21, 0
    %p56 = por %p54, %p55
    %p57 = scmp.ne.s32.totalorder %s43, %s44
    %p58 = scmp.eq.s32.totalorder %s22, 3
    %p59 = por %p57, %p58
    %p61 = scmp.ne.s32.totalorder %s44, %s60
    %p62 = scmp.eq.s32.totalorder %s22, 0
    %p63 = por %p61, %p62
    %s64 = smul.u32 %s24, 4
    %s65 = ssub.s32 %s64, 1
    %p66 = scmp.gt.s32.totalorder %s65, 0
    %s67 = scalar_select %p66, %s65, 0
    %s68 = smul.u32 %s31, 4
    %s69 = ssub.s32 %s68, 1
    %p70 = scmp.gt.s32.totalorder %s69, 0
    %s71 = scalar_select %p70, %s69, 0
    %s72 = ssub.s32 %s23, %s35
    %s73 = ssub.s32 %s67, %s71
    %s74 = sor.u32 %s72, %s73
    %p75 = scmp.eq.s32.totalorder %s74, 0
    %s77 = sadd.s32 %s76, 1
    %s78 = scalar_select %p75, %s76, %s77
    %p81 = pneg %p75
    %p82 = scmp.eq.s32.totalorder %s16, 3
    %p83 = por %p81, %p82
    %p84 = scmp.ne.s32.totalorder %s76, %s79
    %p85 = scmp.eq.s32.totalorder %s16, 0
    %p86 = por %p84, %p85
    %p87 = scmp.ne.s32.totalorder %s76, %s79
    %p88 = scmp.eq.s32.totalorder %s21, 3
    %p89 = por %p87, %p88
    %p90 = scmp.ne.s32.totalorder %s79, %s80
    %p91 = scmp.eq.s32.totalorder %s21, 0
    %p92 = por %p90, %p91
    %p93 = scmp.ne.s32.totalorder %s79, %s80
    %p94 = scmp.eq.s32.totalorder %s22, 3
    %p95 = por %p93, %p94
    %p97 = scmp.ne.s32.totalorder %s80, %s96
    %p98 = scmp.eq.s32.totalorder %s22, 0
    %p99 = por %p97, %p98
    %s100 = smul.u32 %s24, 4
    %s101 = sadd.s32 %s100, 4
    %p102 = scmp.lt.s32.totalorder %s101, 7
    %s103 = scalar_select %p102, %s101, 7
    %s104 = smul.u32 %s31, 4
    %s105 = sadd.s32 %s104, 4
    %p106 = scmp.lt.s32.totalorder %s105, 7
    %s107 = scalar_select %p106, %s105, 7
    %s108 = ssub.s32 %s23, %s35
    %s109 = ssub.s32 %s103, %s107
    %s110 = sor.u32 %s108, %s109
    %p111 = scmp.eq.s32.totalorder %s110, 0
    %s113 = sadd.s32 %s112, 1
    %s114 = scalar_select %p111, %s112, %s113
    %p117 = pneg %p111
    %p118 = scmp.eq.s32.totalorder %s16, 3
    %p119 = por %p117, %p118
    %p120 = scmp.ne.s32.totalorder %s112, %s115
    %p121 = scmp.eq.s32.totalorder %s16, 0
    %p122 = por %p120, %p121
    %p123 = scmp.ne.s32.totalorder %s112, %s115
    %p124 = scmp.eq.s32.totalorder %s21, 3
    %p125 = por %p123, %p124
    %p126 = scmp.ne.s32.totalorder %s115, %s116
    %p127 = scmp.eq.s32.totalorder %s21, 0
    %p128 = por %p126, %p127
    %p129 = scmp.ne.s32.totalorder %s115, %s116
    %p130 = scmp.eq.s32.totalorder %s22, 3
    %p131 = por %p129, %p130
    %p133 = scmp.ne.s32.totalorder %s116, %s132
    %p134 = scmp.eq.s32.totalorder %s22, 0
    %p135 = por %p133, %p134
    %s136 = ssub.s32 %s23, %s35
    %s137 = ssub.s32 %s24, %s31
    %s138 = sor.u32 %s136, %s137
    %p139 = scmp.eq.s32.totalorder %s138, 0
    %s141 = sadd.s32 %s140, 1
    %s142 = scalar_select %p139, %s140, %s141
    %p145 = pneg %p139
    %p146 = scmp.eq.s32.totalorder %s16, 3
    %p147 = por %p145, %p146
    %p148 = scmp.ne.s32.totalorder %s140, %s143
    %p149 = scmp.eq.s32.totalorder %s16, 0
    %p150 = por %p148, %p149
    %p151 = scmp.ne.s32.totalorder %s140, %s143
    %p152 = scmp.eq.s32.totalorder %s21, 3
    %p153 = por %p151, %p152
    %p154 = scmp.ne.s32.totalorder %s143, %s144
    %p155 = scmp.eq.s32.totalorder %s21, 0
    %p156 = por %p154, %p155
    %p157 = scmp.ne.s32.totalorder %s143, %s144
    %p158 = scmp.eq.s32.totalorder %s22, 3
    %p159 = por %p157, %p158
    %p161 = scmp.ne.s32.totalorder %s144, %s160
    %p162 = scmp.eq.s32.totalorder %s22, 0
    %p163 = por %p161, %p162
    %s164 = smul.u32 %s24, 4
    %s165 = ssub.s32 %s164, 1
    %p166 = scmp.gt.s32.totalorder %s165, 0
    %s167 = scalar_select %p166, %s165, 0
    %s168 = smul.u32 %s31, 4
    %s169 = ssub.s32 %s168, 1
    %p170 = scmp.gt.s32.totalorder %s169, 0
    %s171 = scalar_select %p170, %s169, 0
    %s172 = ssub.s32 %s23, %s35
    %s173 = ssub.s32 %s167, %s171
    %s174 = sor.u32 %s172, %s173
    %p175 = scmp.eq.s32.totalorder %s174, 0
    %s177 = sadd.s32 %s176, 1
    %s178 = scalar_select %p175, %s176, %s177
    %p181 = pneg %p175
    %p182 = scmp.eq.s32.totalorder %s16, 3
    %p183 = por %p181, %p182
    %p184 = scmp.ne.s32.totalorder %s176, %s179
    %p185 = scmp.eq.s32.totalorder %s16, 0
    %p186 = por %p184, %p185
    %p187 = scmp.ne.s32.totalorder %s176, %s179
    %p188 = scmp.eq.s32.totalorder %s21, 3
    %p189 = por %p187, %p188
    %p190 = scmp.ne.s32.totalorder %s179, %s180
    %p191 = scmp.eq.s32.totalorder %s21, 0
    %p192 = por %p190, %p191
    %p193 = scmp.ne.s32.totalorder %s179, %s180
    %p194 = scmp.eq.s32.totalorder %s22, 3
    %p195 = por %p193, %p194
    %p197 = scmp.ne.s32.totalorder %s180, %s196
    %p198 = scmp.eq.s32.totalorder %s22, 0
    %p199 = por %p197, %p198
    %s200 = smul.u32 %s24, 4
    %s201 = sadd.s32 %s200, 4
    %p202 = scmp.lt.s32.totalorder %s201, 7
    %s203 = scalar_select %p202, %s201, 7
    %s204 = smul.u32 %s31, 4
    %s205 = sadd.s32 %s204, 4
    %p206 = scmp.lt.s32.totalorder %s205, 7
    %s207 = scalar_select %p206, %s205, 7
    %s208 = ssub.s32 %s23, %s35
    %s209 = ssub.s32 %s203, %s207
    %s210 = sor.u32 %s208, %s209
    %p211 = scmp.eq.s32.totalorder %s210, 0
    %s213 = sadd.s32 %s212, 1
    %s214 = scalar_select %p211, %s212, %s213
    %p217 = pneg %p211
    %p218 = scmp.eq.s32.totalorder %s16, 3
    %p219 = por %p217, %p218
    %p220 = scmp.ne.s32.totalorder %s212, %s215
    %p221 = scmp.eq.s32.totalorder %s16, 0
    %p222 = por %p220, %p221
    %p223 = scmp.ne.s32.totalorder %s212, %s215
    %p224 = scmp.eq.s32.totalorder %s21, 3
    %p225 = por %p223, %p224
    %p226 = scmp.ne.s32.totalorder %s215, %s216
    %p227 = scmp.eq.s32.totalorder %s21, 0
    %p228 = por %p226, %p227
    %p229 = scmp.ne.s32.totalorder %s215, %s216
    %p230 = scmp.eq.s32.totalorder %s22, 3
    %p231 = por %p229, %p230
    %p233 = scmp.ne.s32.totalorder %s216, %s232
    %p234 = scmp.eq.s32.totalorder %s22, 0
    %p235 = por %p233, %p234
    %s237 = sadd.s32 %s236, 1
    %p240 = scmp.eq.s32.totalorder %s16, 3
    %p241 = scmp.ne.s32.totalorder %s236, %s238
    %p242 = scmp.eq.s32.totalorder %s16, 0
    %p243 = por %p241, %p242
    %p244 = scmp.ne.s32.totalorder %s236, %s238
    %p245 = scmp.eq.s32.totalorder %s21, 3
    %p246 = por %p244, %p245
    %p247 = scmp.ne.s32.totalorder %s238, %s239
    %p248 = scmp.eq.s32.totalorder %s21, 0
    %p249 = por %p247, %p248
    %p250 = scmp.ne.s32.totalorder %s238, %s239
    %p251 = scmp.eq.s32.totalorder %s22, 3
    %p252 = por %p250, %p251
    %p254 = scmp.ne.s32.totalorder %s239, %s253
    %p255 = scmp.eq.s32.totalorder %s22, 0
    %p256 = por %p254, %p255
    %s258 = sadd.s32 %s257, 1
    %p261 = scmp.eq.s32.totalorder %s16, 3
    %p262 = scmp.ne.s32.totalorder %s257, %s259
    %p263 = scmp.eq.s32.totalorder %s16, 0
    %p264 = por %p262, %p263
    %p265 = scmp.ne.s32.totalorder %s257, %s259
    %p266 = scmp.eq.s32.totalorder %s21, 3
    %p267 = por %p265, %p266
    %p268 = scmp.ne.s32.totalorder %s259, %s260
    %p269 = scmp.eq.s32.totalorder %s21, 0
    %p270 = por %p268, %p269
    %p271 = scmp.ne.s32.totalorder %s259, %s260
    %p272 = scmp.eq.s32.totalorder %s22, 3
    %p273 = por %p271, %p272
    %p275 = scmp.ne.s32.totalorder %s260, %s274
    %p276 = scmp.eq.s32.totalorder %s22, 0
    %p277 = por %p275, %p276
    %s279 = sadd.s32 %s278, 1
    %p282 = scmp.eq.s32.totalorder %s16, 3
    %p283 = scmp.ne.s32.totalorder %s278, %s280
    %p284 = scmp.eq.s32.totalorder %s16, 0
    %p285 = por %p283, %p284
    %p286 = scmp.ne.s32.totalorder %s278, %s280
    %p287 = scmp.eq.s32.totalorder %s21, 3
    %p288 = por %p286, %p287
    %p289 = scmp.ne.s32.totalorder %s280, %s281
    %p290 = scmp.eq.s32.totalorder %s21, 0
    %p291 = por %p289, %p290
    %p292 = scmp.ne.s32.totalorder %s280, %s281
    %p293 = scmp.eq.s32.totalorder %s22, 3
    %p294 = por %p292, %p293
    %p296 = scmp.ne.s32.totalorder %s281, %s295
    %p297 = scmp.eq.s32.totalorder %s22, 0
    %p298 = por %p296, %p297
    %s300 = sadd.s32 %s299, 1
    %p303 = scmp.eq.s32.totalorder %s16, 3
    %p304 = scmp.ne.s32.totalorder %s299, %s301
    %p305 = scmp.eq.s32.totalorder %s16, 0
    %p306 = por %p304, %p305
    %p307 = scmp.ne.s32.totalorder %s299, %s301
    %p308 = scmp.eq.s32.totalorder %s21, 3
    %p309 = por %p307, %p308
    %p310 = scmp.ne.s32.totalorder %s301, %s302
    %p311 = scmp.eq.s32.totalorder %s21, 0
    %p312 = por %p310, %p311
    %p313 = scmp.ne.s32.totalorder %s301, %s302
    %p314 = scmp.eq.s32.totalorder %s22, 3
    %p315 = por %p313, %p314
    %p317 = scmp.ne.s32.totalorder %s302, %s316
    %p318 = scmp.eq.s32.totalorder %s22, 0
    %p319 = por %p317, %p318
    %s320 = ssub.s32 %s23, %s35
    %s321 = ssub.s32 %s24, %s31
    %s322 = sor.u32 %s320, %s321
    %p323 = scmp.eq.s32.totalorder %s322, 0
    %s325 = sadd.s32 %s324, 1
    %s326 = scalar_select %p323, %s324, %s325
    %p329 = pneg %p323
    %p330 = scmp.eq.s32.totalorder %s16, 3
    %p331 = por %p329, %p330
    %p332 = scmp.ne.s32.totalorder %s324, %s327
    %p333 = scmp.eq.s32.totalorder %s16, 0
    %p334 = por %p332, %p333
    %p335 = scmp.ne.s32.totalorder %s324, %s327
    %p336 = scmp.eq.s32.totalorder %s21, 3
    %p337 = por %p335, %p336
    %p338 = scmp.ne.s32.totalorder %s327, %s328
    %p339 = scmp.eq.s32.totalorder %s21, 0
    %p340 = por %p338, %p339
    %p341 = scmp.ne.s32.totalorder %s327, %s328
    %p342 = scmp.eq.s32.totalorder %s22, 3
    %p343 = por %p341, %p342
    %p345 = scmp.ne.s32.totalorder %s328, %s344
    %p346 = scmp.eq.s32.totalorder %s22, 0
    %p347 = por %p345, %p346
    %p348 = scmp.le.s32.totalorder 1, %s16
    %p349 = scmp.lt.s32.totalorder %s16, 5
    %p350 = pnand %p348, %p349
    %p351 = pneg %p350
    // Predicated region
    $region9: #{up_forward.1} parent=5 // pred_check
      _
    $region10: #{up_forward.1} parent=5 // pred_check_branch
      %353 = sbr.rel (%p350) target = $region12
    $region11: #{up_forward.1} parent=5 // pred_region
      %s354 = ssub.s32 %s16, 1
      // Predicated region
      $region13: #{up_forward.1} parent=11 // pred_check
        %p355 = pneg %p249
      $region14: #{up_forward.1} parent=11 // pred_check_branch
        %357 = sbr.rel (%p355) target = $region16
      $region15: #{up_forward.1} parent=11 // pred_region
        _
      $region16: #{up_forward.1} parent=11 // pred_fallthru
        _
      // Predicated region
      $region17: #{up_forward.1} parent=11 // pred_check
        %p358 = pneg %p270
      $region18: #{up_forward.1} parent=11 // pred_check_branch
        %360 = sbr.rel (%p358) target = $region20
      $region19: #{up_forward.1} parent=11 // pred_region
        _
      $region20: #{up_forward.1} parent=11 // pred_fallthru
        _
      // Predicated region
      $region21: #{up_forward.1} parent=11 // pred_check
        %p361 = pneg %p291
      $region22: #{up_forward.1} parent=11 // pred_check_branch
        %363 = sbr.rel (%p361) target = $region24
      $region23: #{up_forward.1} parent=11 // pred_region
        _
      $region24: #{up_forward.1} parent=11 // pred_fallthru
        _
      // Predicated region
      $region25: #{up_forward.1} parent=11 // pred_check
        %p364 = pneg %p312
      $region26: #{up_forward.1} parent=11 // pred_check_branch
        %366 = sbr.rel (%p364) target = $region28
      $region27: #{up_forward.1} parent=11 // pred_region
        _
      $region28: #{up_forward.1} parent=11 // pred_fallthru
        _
    $region12: #{up_forward.1} parent=5 // pred_fallthru
      _
    %p367 = scmp.lt.s32.totalorder %s16, 4
    // Predicated region
    $region29: #{up_forward.1} parent=5 // pred_check
      %p368 = pneg %p367
    $region30: #{up_forward.1} parent=5 // pred_check_branch
      %370 = sbr.rel (%p368) target = $region32
    $region31: #{up_forward.1} parent=5 // pred_region
      // Predicated region
      $region33: #{up_forward.1} parent=31 // pred_check
        %p371 = pneg %p50
      $region34: #{up_forward.1} parent=31 // pred_check_branch
        %373 = sbr.rel (%p371) target = $region36
      $region35: #{up_forward.1} parent=31 // pred_region
        %s374 = smul.u32 4, %s24
        %p375 = scmp.lt.s32.totalorder %s23, 1
        %s376 = scalar_select %p375, %s23, 1
        %p377 = scmp.lt.s32.totalorder %s374, 7
        %s378 = scalar_select %p377, %s374, 7
        %s379 = smul.addr %s376, 8
        %s380 = sadd.s32 %s378, %s379
        %s381 = smul.addr %s380, 8
        %s382 = scalar_lea.vmem %s0, %s381
        %s383 = smul.u32 4, %s24
      $region36: #{up_forward.1} parent=31 // pred_fallthru
        _
      // Predicated region
      $region37: #{up_forward.1} parent=31 // pred_check
        %p384 = pneg %p86
      $region38: #{up_forward.1} parent=31 // pred_check_branch
        %386 = sbr.rel (%p384) target = $region40
      $region39: #{up_forward.1} parent=31 // pred_region
        %s387 = smul.u32 %s24, 4
        %s388 = ssub.s32 %s387, 1
        %p389 = scmp.gt.s32.totalorder %s388, 0
        %s390 = scalar_select %p389, %s388, 0
        %p391 = scmp.lt.s32.totalorder %s23, 1
        %s392 = scalar_select %p391, %s23, 1
        %p393 = scmp.lt.s32.totalorder %s390, 7
        %s394 = scalar_select %p393, %s390, 7
        %s395 = smul.addr %s392, 8
        %s396 = sadd.s32 %s394, %s395
        %s397 = smul.addr %s396, 8
        %s398 = scalar_lea.vmem %s1, %s397
        %s399 = smul.u32 %s24, 4
        %s400 = ssub.s32 %s399, 1
        %p401 = scmp.gt.s32.totalorder %s400, 0
        %s402 = scalar_select %p401, %s400, 0
      $region40: #{up_forward.1} parent=31 // pred_fallthru
        _
      // Predicated region
      $region41: #{up_forward.1} parent=31 // pred_check
        %p403 = pneg %p122
      $region42: #{up_forward.1} parent=31 // pred_check_branch
        %405 = sbr.rel (%p403) target = $region44
      $region43: #{up_forward.1} parent=31 // pred_region
        %s406 = smul.u32 %s24, 4
        %s407 = sadd.s32 %s406, 4
        %p408 = scmp.lt.s32.totalorder %s407, 7
        %s409 = scalar_select %p408, %s407, 7
        %p410 = scmp.lt.s32.totalorder %s23, 1
        %s411 = scalar_select %p410, %s23, 1
        %p412 = scmp.lt.s32.totalorder %s409, 7
        %s413 = scalar_select %p412, %s409, 7
        %s414 = smul.addr %s411, 8
        %s415 = sadd.s32 %s413, %s414
        %s416 = smul.addr %s415, 8
        %s417 = scalar_lea.vmem %s2, %s416
        %s418 = smul.u32 %s24, 4
        %s419 = sadd.s32 %s418, 4
        %p420 = scmp.lt.s32.totalorder %s419, 7
        %s421 = scalar_select %p420, %s419, 7
      $region44: #{up_forward.1} parent=31 // pred_fallthru
        _
      // Predicated region
      $region45: #{up_forward.1} parent=31 // pred_check
        %p422 = pneg %p150
      $region46: #{up_forward.1} parent=31 // pred_check_branch
        %424 = sbr.rel (%p422) target = $region48
      $region47: #{up_forward.1} parent=31 // pred_region
        %s425 = smul.u32 4, %s24
        %p426 = scmp.lt.s32.totalorder %s23, 1
        %s427 = scalar_select %p426, %s23, 1
        %p428 = scmp.lt.s32.totalorder %s425, 7
        %s429 = scalar_select %p428, %s425, 7
        %s430 = smul.addr %s429, 2
        %s431 = smul.addr %s427, 16
        %s432 = sadd.s32 %s430, %s431
        %s433 = smul.addr %s432, 8
        %s434 = scalar_lea.vmem %s3, %s433
        %s435 = smul.u32 4, %s24
      $region48: #{up_forward.1} parent=31 // pred_fallthru
        _
      // Predicated region
      $region49: #{up_forward.1} parent=31 // pred_check
        %p436 = pneg %p186
      $region50: #{up_forward.1} parent=31 // pred_check_branch
        %438 = sbr.rel (%p436) target = $region52
      $region51: #{up_forward.1} parent=31 // pred_region
        %s439 = smul.u32 %s24, 4
        %s440 = ssub.s32 %s439, 1
        %p441 = scmp.gt.s32.totalorder %s440, 0
        %s442 = scalar_select %p441, %s440, 0
        %p443 = scmp.lt.s32.totalorder %s23, 1
        %s444 = scalar_select %p443, %s23, 1
        %p445 = scmp.lt.s32.totalorder %s442, 7
        %s446 = scalar_select %p445, %s442, 7
        %s447 = smul.addr %s446, 2
        %s448 = smul.addr %s444, 16
        %s449 = sadd.s32 %s447, %s448
        %s450 = smul.addr %s449, 8
        %s451 = scalar_lea.vmem %s4, %s450
        %s452 = smul.u32 %s24, 4
        %s453 = ssub.s32 %s452, 1
        %p454 = scmp.gt.s32.totalorder %s453, 0
        %s455 = scalar_select %p454, %s453, 0
      $region52: #{up_forward.1} parent=31 // pred_fallthru
        _
      // Predicated region
      $region53: #{up_forward.1} parent=31 // pred_check
        %p456 = pneg %p222
      $region54: #{up_forward.1} parent=31 // pred_check_branch
        %458 = sbr.rel (%p456) target = $region56
      $region55: #{up_forward.1} parent=31 // pred_region
        %s459 = smul.u32 %s24, 4
        %s460 = sadd.s32 %s459, 4
        %p461 = scmp.lt.s32.totalorder %s460, 7
        %s462 = scalar_select %p461, %s460, 7
        %p463 = scmp.lt.s32.totalorder %s23, 1
        %s464 = scalar_select %p463, %s23, 1
        %p465 = scmp.lt.s32.totalorder %s462, 7
        %s466 = scalar_select %p465, %s462, 7
        %s467 = smul.addr %s466, 2
        %s468 = smul.addr %s464, 16
        %s469 = sadd.s32 %s467, %s468
        %s470 = smul.addr %s469, 8
        %s471 = scalar_lea.vmem %s5, %s470
        %s472 = smul.u32 %s24, 4
        %s473 = sadd.s32 %s472, 4
        %p474 = scmp.lt.s32.totalorder %s473, 7
        %s475 = scalar_select %p474, %s473, 7
      $region56: #{up_forward.1} parent=31 // pred_fallthru
        _
    $region32: #{up_forward.1} parent=5 // pred_fallthru
      _
    %p476 = scmp.le.s32.totalorder 1, %s16
    %p477 = scmp.lt.s32.totalorder %s16, 5
    %p478 = pnand %p476, %p477
    %p479 = pneg %p478
    // Predicated region
    $region57: #{up_forward.1} parent=5 // pred_check
      _
    $region58: #{up_forward.1} parent=5 // pred_check_branch
      %481 = sbr.rel (%p478) target = $region60
    $region59: #{up_forward.1} parent=5 // pred_region
      %s482 = ssub.s32 %s16, 1
      %s483 = smul.u32 4, %s26
      %p484 = scmp.lt.s32.totalorder %s25, 1
      %s485 = scalar_select %p484, %s25, 1
      %p486 = scmp.lt.s32.totalorder %s483, 7
      %s487 = scalar_select %p486, %s483, 7
      %s488 = smul.addr %s485, 8
      %s489 = sadd.s32 %s487, %s488
      %s490 = smul.addr %s489, 8
      %s491 = scalar_lea.vmem %s0, %s490
      %p492 = pneg %p56
      %p493 = pneg %p53
      %s494 = smul.u32 %s26, 4
      %s495 = ssub.s32 %s494, 1
      %p496 = scmp.gt.s32.totalorder %s495, 0
      %s497 = scalar_select %p496, %s495, 0
      %p498 = scmp.lt.s32.totalorder %s25, 1
      %s499 = scalar_select %p498, %s25, 1
      %p500 = scmp.lt.s32.totalorder %s497, 7
      %s501 = scalar_select %p500, %s497, 7
      %s502 = smul.addr %s499, 8
      %s503 = sadd.s32 %s501, %s502
      %s504 = smul.addr %s503, 8
      %s505 = scalar_lea.vmem %s1, %s504
      %p506 = pneg %p92
      %p507 = pneg %p89
      %s508 = smul.u32 %s26, 4
      %s509 = sadd.s32 %s508, 4
      %p510 = scmp.lt.s32.totalorder %s509, 7
      %s511 = scalar_select %p510, %s509, 7
      %p512 = scmp.lt.s32.totalorder %s25, 1
      %s513 = scalar_select %p512, %s25, 1
      %p514 = scmp.lt.s32.totalorder %s511, 7
      %s515 = scalar_select %p514, %s511, 7
      %s516 = smul.addr %s513, 8
      %s517 = sadd.s32 %s515, %s516
      %s518 = smul.addr %s517, 8
      %s519 = scalar_lea.vmem %s2, %s518
      %p520 = pneg %p128
      %p521 = pneg %p125
      %s522 = smul.u32 4, %s26
      %p523 = scmp.lt.s32.totalorder %s25, 1
      %s524 = scalar_select %p523, %s25, 1
      %p525 = scmp.lt.s32.totalorder %s522, 7
      %s526 = scalar_select %p525, %s522, 7
      %s527 = smul.addr %s526, 2
      %s528 = smul.addr %s524, 16
      %s529 = sadd.s32 %s527, %s528
      %s530 = smul.addr %s529, 8
      %s531 = scalar_lea.vmem %s3, %s530
      %p532 = pneg %p156
      %p533 = pneg %p153
      %s534 = smul.u32 %s26, 4
      %s535 = ssub.s32 %s534, 1
      %p536 = scmp.gt.s32.totalorder %s535, 0
      %s537 = scalar_select %p536, %s535, 0
      %p538 = scmp.lt.s32.totalorder %s25, 1
      %s539 = scalar_select %p538, %s25, 1
      %p540 = scmp.lt.s32.totalorder %s537, 7
      %s541 = scalar_select %p540, %s537, 7
      %s542 = smul.addr %s541, 2
      %s543 = smul.addr %s539, 16
      %s544 = sadd.s32 %s542, %s543
      %s545 = smul.addr %s544, 8
      %s546 = scalar_lea.vmem %s4, %s545
      %p547 = pneg %p192
      %p548 = pneg %p189
      %s549 = smul.u32 %s26, 4
      %s550 = sadd.s32 %s549, 4
      %p551 = scmp.lt.s32.totalorder %s550, 7
      %s552 = scalar_select %p551, %s550, 7
      %p553 = scmp.lt.s32.totalorder %s25, 1
      %s554 = scalar_select %p553, %s25, 1
      %p555 = scmp.lt.s32.totalorder %s552, 7
      %s556 = scalar_select %p555, %s552, 7
      %s557 = smul.addr %s556, 2
      %s558 = smul.addr %s554, 16
      %s559 = sadd.s32 %s557, %s558
      %s560 = smul.addr %s559, 8
      %s561 = scalar_lea.vmem %s5, %s560
      %p562 = pneg %p228
      %p563 = pneg %p225
      %p564 = pneg %p249
      %p565 = pneg %p246
      %p566 = pneg %p270
      %p567 = pneg %p267
      %p568 = pneg %p291
      %p569 = pneg %p288
      %p570 = pneg %p312
      %p571 = pneg %p309
      %p572 = pneg %p340
      %p573 = pneg %p337
      %s574 = smul.u32 4, %s26
      %p575 = scmp.lt.s32.totalorder %s25, 1
      %s576 = scalar_select %p575, %s25, 1
      %p577 = scmp.lt.s32.totalorder %s574, 7
      %s578 = scalar_select %p577, %s574, 7
      %s579 = smul.addr %s578, 2
      %s580 = smul.addr %s576, 16
      %s581 = sadd.s32 %s579, %s580
      %s582 = smul.addr %s581, 8
      %s583 = scalar_lea.vmem %s10, %s582
      %s584 = smul.u32 4, %s26
      %p585 = scmp.lt.s32.totalorder %s25, 1
      %s586 = scalar_select %p585, %s25, 1
      %p587 = scmp.lt.s32.totalorder %s584, 7
      %s588 = scalar_select %p587, %s584, 7
      %s589 = smul.addr %s586, 8
      %s590 = sadd.s32 %s588, %s589
      %s591 = smul.addr %s590, 8
      %s592 = scalar_lea.vmem %s0, %s591
      %s593 = smul.u32 4, %s26
      %s594 = smul.u32 %s26, 4
      %s595 = ssub.s32 %s594, 1
      %p596 = scmp.gt.s32.totalorder %s595, 0
      %s597 = scalar_select %p596, %s595, 0
      %p598 = scmp.lt.s32.totalorder %s25, 1
      %s599 = scalar_select %p598, %s25, 1
      %p600 = scmp.lt.s32.totalorder %s597, 7
      %s601 = scalar_select %p600, %s597, 7
      %s602 = smul.addr %s599, 8
      %s603 = sadd.s32 %s601, %s602
      %s604 = smul.addr %s603, 8
      %s605 = scalar_lea.vmem %s1, %s604
      %s606 = smul.u32 %s26, 4
      %s607 = ssub.s32 %s606, 1
      %p608 = scmp.gt.s32.totalorder %s607, 0
      %s609 = scalar_select %p608, %s607, 0
      %s610 = smul.u32 %s26, 4
      %s611 = sadd.s32 %s610, 4
      %p612 = scmp.lt.s32.totalorder %s611, 7
      %s613 = scalar_select %p612, %s611, 7
      %p614 = scmp.lt.s32.totalorder %s25, 1
      %s615 = scalar_select %p614, %s25, 1
      %p616 = scmp.lt.s32.totalorder %s613, 7
      %s617 = scalar_select %p616, %s613, 7
      %s618 = smul.addr %s615, 8
      %s619 = sadd.s32 %s617, %s618
      %s620 = smul.addr %s619, 8
      %s621 = scalar_lea.vmem %s2, %s620
      %s622 = smul.u32 %s26, 4
      %s623 = sadd.s32 %s622, 4
      %p624 = scmp.lt.s32.totalorder %s623, 7
      %s625 = scalar_select %p624, %s623, 7
      %s626 = smul.u32 4, %s26
      %p627 = scmp.lt.s32.totalorder %s25, 1
      %s628 = scalar_select %p627, %s25, 1
      %p629 = scmp.lt.s32.totalorder %s626, 7
      %s630 = scalar_select %p629, %s626, 7
      %s631 = smul.addr %s630, 2
      %s632 = smul.addr %s628, 16
      %s633 = sadd.s32 %s631, %s632
      %s634 = smul.addr %s633, 8
      %s635 = scalar_lea.vmem %s3, %s634
      %s636 = smul.u32 4, %s26
      %s637 = smul.u32 %s26, 4
      %s638 = ssub.s32 %s637, 1
      %p639 = scmp.gt.s32.totalorder %s638, 0
      %s640 = scalar_select %p639, %s638, 0
      %p641 = scmp.lt.s32.totalorder %s25, 1
      %s642 = scalar_select %p641, %s25, 1
      %p643 = scmp.lt.s32.totalorder %s640, 7
      %s644 = scalar_select %p643, %s640, 7
      %s645 = smul.addr %s644, 2
      %s646 = smul.addr %s642, 16
      %s647 = sadd.s32 %s645, %s646
      %s648 = smul.addr %s647, 8
      %s649 = scalar_lea.vmem %s4, %s648
      %s650 = smul.u32 %s26, 4
      %s651 = ssub.s32 %s650, 1
      %p652 = scmp.gt.s32.totalorder %s651, 0
      %s653 = scalar_select %p652, %s651, 0
      %s654 = smul.u32 %s26, 4
      %s655 = sadd.s32 %s654, 4
      %p656 = scmp.lt.s32.totalorder %s655, 7
      %s657 = scalar_select %p656, %s655, 7
      %p658 = scmp.lt.s32.totalorder %s25, 1
      %s659 = scalar_select %p658, %s25, 1
      %p660 = scmp.lt.s32.totalorder %s657, 7
      %s661 = scalar_select %p660, %s657, 7
      %s662 = smul.addr %s661, 2
      %s663 = smul.addr %s659, 16
      %s664 = sadd.s32 %s662, %s663
      %s665 = smul.addr %s664, 8
      %s666 = scalar_lea.vmem %s5, %s665
      %s667 = smul.u32 %s26, 4
      %s668 = sadd.s32 %s667, 4
      %p669 = scmp.lt.s32.totalorder %s668, 7
      %s670 = scalar_select %p669, %s668, 7
      %s671 = smul.u32 4, %s26
      %p672 = scmp.lt.s32.totalorder %s25, 1
      %s673 = scalar_select %p672, %s25, 1
      %p674 = scmp.lt.s32.totalorder %s671, 7
      %s675 = scalar_select %p674, %s671, 7
      %s676 = smul.addr %s675, 2
      %s677 = smul.addr %s673, 16
      %s678 = sadd.s32 %s676, %s677
      %s679 = smul.addr %s678, 8
      %s680 = scalar_lea.vmem %s10, %s679
      %s681 = smul.u32 4, %s26
      %vm683 = vcmask 122880
      %684 = vst.msk [vmem:[#allocation2] sm:$0x1] %vm683, 0.0
      %685 = vst.msk [vmem:[#allocation2 + $0x10] sm:$0x1] %vm683, 0.0
      %686 = vst.msk [vmem:[#allocation2 + $0x20] sm:$0x1] %vm683, 0.0
      %687 = vst.msk [vmem:[#allocation2 + $0x30] sm:$0x1] %vm683, 0.0
      %688 = vst.msk [vmem:[#allocation2 + $0x40] sm:$0x1] %vm683, 0.0
      %689 = vst.msk [vmem:[#allocation2 + $0x50] sm:$0x1] %vm683, 0.0
      %690 = vst.msk [vmem:[#allocation2 + $0x60] sm:$0x1] %vm683, 0.0
      %691 = vst.msk [vmem:[#allocation2 + $0x70] sm:$0x1] %vm683, 0.0
      %692 = vst.msk [vmem:[#allocation2 + $0x80] sm:$0x1] %vm683, 0.0
      %693 = vst.msk [vmem:[#allocation2 + $0x90] sm:$0x1] %vm683, 0.0
      %694 = vst.msk [vmem:[#allocation2 + $0xa0] sm:$0x1] %vm683, 0.0
      %695 = vst.msk [vmem:[#allocation2 + $0xb0] sm:$0x1] %vm683, 0.0
      %696 = vst.msk [vmem:[#allocation2 + $0x9] sm:$0x1] %vm683, 0.0
      %697 = vst.msk [vmem:[#allocation2 + $0x19] sm:$0x1] %vm683, 0.0
      %698 = vst.msk [vmem:[#allocation2 + $0x29] sm:$0x1] %vm683, 0.0
      %699 = vst.msk [vmem:[#allocation2 + $0x39] sm:$0x1] %vm683, 0.0
      %700 = vst.msk [vmem:[#allocation2 + $0x49] sm:$0x1] %vm683, 0.0
      %701 = vst.msk [vmem:[#allocation2 + $0x59] sm:$0x1] %vm683, 0.0
      %702 = vst.msk [vmem:[#allocation2 + $0x69] sm:$0x1] %vm683, 0.0
      %703 = vst.msk [vmem:[#allocation2 + $0x79] sm:$0x1] %vm683, 0.0
      %704 = vst.msk [vmem:[#allocation2 + $0x89] sm:$0x1] %vm683, 0.0
      %705 = vst.msk [vmem:[#allocation2 + $0x99] sm:$0x1] %vm683, 0.0
      %706 = vst.msk [vmem:[#allocation2 + $0xa9] sm:$0x1] %vm683, 0.0
      %707 = vst.msk [vmem:[#allocation2 + $0xb9] sm:$0x1] %vm683, 0.0
      %v708 = vld [vmem:[%s592] sm:$0xff]
      %v709 = vld [vmem:[%s592 + $0x8] sm:$0xff]
      %v710 = vld [vmem:[%s592 + $0x10] sm:$0xff]
      %v711 = vld [vmem:[%s592 + $0x18] sm:$0xff]
      %v712 = vpack.c.bf16 %v709, %v708
      %v713 = vpack.c.bf16 %v711, %v710
      %v714 = vld [vmem:[%s6] sm:$0xf]
      %v715 = vld [vmem:[%s7] sm:$0x1]
      %v717 = vlaneseq
      %v718 = vshrl.u32 %v717, 7
      %v719 = vsub.s32 0, %v718
      %v720 = vrot.slane %v715, %v719
      %vm722 = vcmask 64512
      %v724 = vsel %vm722, %v712, 0
      %v727 = vsel %vm722, %v713, 0
      %vm729 = vcmask 1043456
      %v731 = vsel %vm729, %v714, 0
      %733 = vmatprep.subr.bf16.mxu0 0
      %734 = vmatpush1.bf16.msra.mxu0 %v731
      %735 = vmatprep.subr.bf16.mxu0 0
      %736 = vmatpush1.bf16.msra.mxu0 0
      %737 = vmatprep.subr.bf16.mxu0 0
      %738 = vmatpush1.bf16.msra.mxu0 0
      %739 = vmatprep.subr.bf16.mxu0 0
      %740 = vmatpush1.bf16.msra.mxu0 0
      %741 = vmatprep.subr.bf16.mxu0 0
      %742 = vmatpush1.bf16.msra.mxu0 0
      %743 = vmatprep.subr.bf16.mxu0 0
      %744 = vmatpush1.bf16.msra.mxu0 0
      %745 = vmatprep.subr.bf16.mxu0 0
      %746 = vmatpush1.bf16.msra.mxu0 0
      %747 = vmatprep.subr.bf16.mxu0 0
      %748 = vmatpush1.bf16.msra.mxu0 0
      %749 = vmatprep.subr.bf16.mxu0 0
      %750 = vmatpush1.bf16.msra.mxu0 0
      %751 = vmatprep.subr.bf16.mxu0 0
      %752 = vmatpush1.bf16.msra.mxu0 0
      %753 = vmatprep.subr.bf16.mxu0 0
      %754 = vmatpush1.bf16.msra.mxu0 0
      %755 = vmatprep.subr.bf16.mxu0 0
      %756 = vmatpush1.bf16.msra.mxu0 0
      %757 = vmatprep.subr.bf16.mxu0 0
      %758 = vmatpush1.bf16.msra.mxu0 0
      %759 = vmatprep.subr.bf16.mxu0 0
      %760 = vmatpush1.bf16.msra.mxu0 0
      %761 = vmatprep.subr.bf16.mxu0 0
      %762 = vmatpush1.bf16.msra.mxu0 0
      %763 = vmatprep.subr.bf16.mxu0 0
      %764 = vmatpush1.bf16.msra.mxu0 0
      %765 = vmatprep.mubr.bf16.mxu0 0
      %766 = vmatmul.mubr.bf16.gmra.mrb[0].mxu0 %v724
      %v767 = vpop.f32.mrb[0].mxu0
      %v768 = vadd.f32 %v720, %v767
      %v769 = vpop.f32.mrb[0].mxu0
      %v770 = vpop.f32.mrb[0].mxu0
      %v771 = vadd.f32 %v720, %v770
      %v772 = vpop.f32.mrb[0].mxu0
      %773 = vmatprep.mubr.bf16.mxu0 0
      %774 = vmatmul.mubr.bf16.gmra.mrb[0].mxu0 %v727
      %v775 = vpop.f32.mrb[0].mxu0
      %v776 = vadd.f32 %v720, %v775
      %v777 = vpop.f32.mrb[0].mxu0
      %v778 = vpop.f32.mrb[0].mxu0
      %v779 = vadd.f32 %v720, %v778
      %v780 = vpop.f32.mrb[0].mxu0
      %781 = vdwg.mxu0
      %vm782 = vcmp.gt.f32.partialorder %v768, 0.0
      %vm783 = vcmp.gt.f32.partialorder %v771, 0.0
      %vm784 = vcmp.gt.f32.partialorder %v776, 0.0
      %vm785 = vcmp.gt.f32.partialorder %v779, 0.0
      %v786 = vmul.f32 %v768, 0.01
      %v787 = vmul.f32 %v771, 0.01
      %v788 = vmul.f32 %v776, 0.01
      %v789 = vmul.f32 %v779, 0.01
      %v790 = vsel %vm782, %v768, %v786
      %v791 = vsel %vm783, %v771, %v787
      %v792 = vsel %vm784, %v776, %v788
      %v793 = vsel %vm785, %v779, %v789
      %v794 = vld [vmem:[%s635] sm:$0xff]
      %v795 = vld [vmem:[%s635 + $0x10] sm:$0xff]
      %v796 = vld [vmem:[%s635 + $0x20] sm:$0xff]
      %v797 = vld [vmem:[%s635 + $0x30] sm:$0xff]
      %v798 = vadd.f32 %v790, %v794
      %v799 = vadd.f32 %v791, %v795
      %v800 = vadd.f32 %v792, %v796
      %v801 = vadd.f32 %v793, %v797
      %s802 = scalar_lea.vmem [#allocation2], 16
      %vm803 = vcmask 130048
      %804 = vst.msk [vmem:[%s802 + $0x1] sm:$0xff] %vm803, %v798
      %805 = vst.msk [vmem:[%s802 + $0x11] sm:$0xff] %vm803, %v799
      %806 = vst.msk [vmem:[%s802 + $0x21] sm:$0xff] %vm803, %v800
      %807 = vst.msk [vmem:[%s802 + $0x31] sm:$0xff] %vm803, %v801
      %s808 = scalar_lea.vmem %s635, 8
      %v809 = vld [vmem:[%s808] sm:$0xff]
      %v810 = vld [vmem:[%s808 + $0x10] sm:$0xff]
      %v811 = vld [vmem:[%s808 + $0x20] sm:$0xff]
      %v812 = vld [vmem:[%s808 + $0x30] sm:$0xff]
      %817 = vrot.lane.b32.xlu0 %v809, 16
      %v818 = vpop.permute.xlu0 %817
      %819 = vrot.lane.b32.xlu0 %v810, 16
      %v820 = vpop.permute.xlu0 %819
      %821 = vrot.lane.b32.xlu0 %v811, 16
      %v822 = vpop.permute.xlu0 %821
      %823 = vrot.lane.b32.xlu0 %v812, 16
      %v824 = vpop.permute.xlu0 %823
      %v829 = vadd.f32 %v790, %v818
      %v830 = vadd.f32 %v791, %v820
      %v831 = vadd.f32 %v792, %v822
      %v832 = vadd.f32 %v793, %v824
      %837 = vrot.lane.b32.xlu0 %v829, 112
      %v838 = vpop.permute.xlu0 %837
      %839 = vrot.lane.b32.xlu0 %v830, 112
      %v840 = vpop.permute.xlu0 %839
      %841 = vrot.lane.b32.xlu0 %v831, 112
      %v842 = vpop.permute.xlu0 %841
      %843 = vrot.lane.b32.xlu0 %v832, 112
      %v844 = vpop.permute.xlu0 %843
      %s849 = scalar_lea.vmem [#allocation2], 112
      %850 = vst.msk [vmem:[%s849 + $0x1] sm:$0xff] %vm803, %v838
      %851 = vst.msk [vmem:[%s849 + $0x11] sm:$0xff] %vm803, %v840
      %852 = vst.msk [vmem:[%s849 + $0x21] sm:$0xff] %vm803, %v842
      %853 = vst.msk [vmem:[%s849 + $0x31] sm:$0xff] %vm803, %v844
      %p854 = scmp.gt.s32.totalorder %s26, 0
      %s855 = scalar_select %p854, 1, 0
      %s856 = scvt.s32.f32 %s855
      %p857 = scmp.lt.s32.totalorder %s26, 1
      %s858 = scalar_select %p857, 1, 0
      %s859 = scvt.s32.f32 %s858
      %v860 = vld [vmem:[%s605] sm:$0xff]
      %v861 = vpack.c.bf16 %v860, %v860
      %v862 = vld [vmem:[%s6] sm:$0xf]
      %v863 = vld [vmem:[%s7] sm:$0x1]
      %v865 = vlaneseq
      %v866 = vshrl.u32 %v865, 7
      %v867 = vsub.s32 0, %v866
      %v868 = vrot.slane %v863, %v867
      %v870 = vunpack.c.l.b16 %v862
      %v871 = vpack.c.b16 %v870, %v870
      %872 = vrot.lane.b32.xlu0 %v871, 112
      %v873 = vpop.permute.xlu0 %872
      %874 = vrot.lane.b32.xlu0 %v868, 112
      %v875 = vpop.permute.xlu0 %874
      %v878 = vsel %vm722, %v861, 0
      %v881 = vsel %vm729, %v873, 0
      %883 = vmatprep.subr.bf16.mxu0 0
      %884 = vmatpush1.bf16.msra.mxu0 %v881
      %885 = vmatprep.subr.bf16.mxu0 0
      %886 = vmatpush1.bf16.msra.mxu0 0
      %887 = vmatprep.subr.bf16.mxu0 0
      %888 = vmatpush1.bf16.msra.mxu0 0
      %889 = vmatprep.subr.bf16.mxu0 0
      %890 = vmatpush1.bf16.msra.mxu0 0
      %891 = vmatprep.subr.bf16.mxu0 0
      %892 = vmatpush1.bf16.msra.mxu0 0
      %893 = vmatprep.subr.bf16.mxu0 0
      %894 = vmatpush1.bf16.msra.mxu0 0
      %895 = vmatprep.subr.bf16.mxu0 0
      %896 = vmatpush1.bf16.msra.mxu0 0
      %897 = vmatprep.subr.bf16.mxu0 0
      %898 = vmatpush1.bf16.msra.mxu0 0
      %899 = vmatprep.subr.bf16.mxu0 0
      %900 = vmatpush1.bf16.msra.mxu0 0
      %901 = vmatprep.subr.bf16.mxu0 0
      %902 = vmatpush1.bf16.msra.mxu0 0
      %903 = vmatprep.subr.bf16.mxu0 0
      %904 = vmatpush1.bf16.msra.mxu0 0
      %905 = vmatprep.subr.bf16.mxu0 0
      %906 = vmatpush1.bf16.msra.mxu0 0
      %907 = vmatprep.subr.bf16.mxu0 0
      %908 = vmatpush1.bf16.msra.mxu0 0
      %909 = vmatprep.subr.bf16.mxu0 0
      %910 = vmatpush1.bf16.msra.mxu0 0
      %911 = vmatprep.subr.bf16.mxu0 0
      %912 = vmatpush1.bf16.msra.mxu0 0
      %913 = vmatprep.subr.bf16.mxu0 0
      %914 = vmatpush1.bf16.msra.mxu0 0
      %915 = vmatprep.mubr.bf16.mxu0 0
      %916 = vmatmul.mubr.bf16.gmra.mrb[0].mxu0 %v878
      %v917 = vpop.f32.mrb[0].mxu0
      %v918 = vadd.f32 %v875, %v917
      %v919 = vpop.f32.mrb[0].mxu0
      %v920 = vpop.f32.mrb[0].mxu0
      %v921 = vpop.f32.mrb[0].mxu0
      %922 = vdwg.mxu0
      %vm923 = vcmp.gt.f32.partialorder %v918, 0.0
      %v924 = vmul.f32 %v918, 0.01
      %v925 = vsel %vm923, %v918, %v924
      %s926 = scalar_lea.vmem %s649, 8
      %v927 = vld [vmem:[%s926] sm:$0xff]
      %v928 = vadd.f32 %v925, %v927
      %v929 = vstv %s856
      %v930 = vmul.f32 %v928, %v929
      %s931 = scalar_lea.vmem [#allocation2], 96
      %932 = vst.msk [vmem:[%s931 + $0x1] sm:$0xff] %vm803, %v930
      %v933 = vld [vmem:[%s621] sm:$0xff]
      %v934 = vpack.c.bf16 %v933, %v933
      %v935 = vld [vmem:[%s6] sm:$0xf]
      %v936 = vld [vmem:[%s7] sm:$0x1]
      %v938 = vlaneseq
      %v939 = vshrl.u32 %v938, 7
      %v940 = vsub.s32 0, %v939
      %v941 = vrot.slane %v936, %v940
      %v944 = vsel %vm722, %v934, 0
      %v947 = vsel %vm729, %v935, 0
      %949 = vmatprep.subr.bf16.mxu0 0
      %950 = vmatpush1.bf16.msra.mxu0 %v947
      %951 = vmatprep.subr.bf16.mxu0 0
      %952 = vmatpush1.bf16.msra.mxu0 0
      %953 = vmatprep.subr.bf16.mxu0 0
      %954 = vmatpush1.bf16.msra.mxu0 0
      %955 = vmatprep.subr.bf16.mxu0 0
      %956 = vmatpush1.bf16.msra.mxu0 0
      %957 = vmatprep.subr.bf16.mxu0 0
      %958 = vmatpush1.bf16.msra.mxu0 0
      %959 = vmatprep.subr.bf16.mxu0 0
      %960 = vmatpush1.bf16.msra.mxu0 0
      %961 = vmatprep.subr.bf16.mxu0 0
      %962 = vmatpush1.bf16.msra.mxu0 0
      %963 = vmatprep.subr.bf16.mxu0 0
      %964 = vmatpush1.bf16.msra.mxu0 0
      %965 = vmatprep.subr.bf16.mxu0 0
      %966 = vmatpush1.bf16.msra.mxu0 0
      %967 = vmatprep.subr.bf16.mxu0 0
      %968 = vmatpush1.bf16.msra.mxu0 0
      %969 = vmatprep.subr.bf16.mxu0 0
      %970 = vmatpush1.bf16.msra.mxu0 0
      %971 = vmatprep.subr.bf16.mxu0 0
      %972 = vmatpush1.bf16.msra.mxu0 0
      %973 = vmatprep.subr.bf16.mxu0 0
      %974 = vmatpush1.bf16.msra.mxu0 0
      %975 = vmatprep.subr.bf16.mxu0 0
      %976 = vmatpush1.bf16.msra.mxu0 0
      %977 = vmatprep.subr.bf16.mxu0 0
      %978 = vmatpush1.bf16.msra.mxu0 0
      %979 = vmatprep.subr.bf16.mxu0 0
      %980 = vmatpush1.bf16.msra.mxu0 0
      %981 = vmatprep.mubr.bf16.mxu0 0
      %982 = vmatmul.mubr.bf16.gmra.mrb[0].mxu0 %v944
      %v983 = vpop.f32.mrb[0].mxu0
      %v984 = vadd.f32 %v941, %v983
      %v985 = vpop.f32.mrb[0].mxu0
      %v986 = vpop.f32.mrb[0].mxu0
      %v987 = vpop.f32.mrb[0].mxu0
      %988 = vdwg.mxu0
      %vm989 = vcmp.gt.f32.partialorder %v984, 0.0
      %v990 = vmul.f32 %v984, 0.01
      %v991 = vsel %vm989, %v984, %v990
      %v992 = vld [vmem:[%s666] sm:$0xff]
      %v993 = vadd.f32 %v991, %v992
      %v994 = vstv %s859
      %v995 = vmul.f32 %v993, %v994
      %s996 = scalar_lea.vmem [#allocation2], 80
      %997 = vst.msk [vmem:[%s996 + $0x1] sm:$0xff] %vm803, %v995
      %v998 = vld [vmem:[%s931] sm:$0xff]
      %v999 = vld [vmem:[%s931 + $0x10] sm:$0xff]
      %v1000 = vld [vmem:[%s931 + $0x20] sm:$0xff]
      %v1001 = vld [vmem:[%s931 + $0x30] sm:$0xff]
      %v1002 = vpack.c.bf16 %v998, %v998
      %v1003 = vpack.c.bf16 %v999, %v999
      %v1004 = vpack.c.bf16 %v1000, %v1000
      %v1005 = vpack.c.bf16 %v1001, %v1001
      %vm1006 = vcmask 125952
      %1007 = vst.msk [vmem:[#allocation3] sm:$0xf] %vm1006, %v1002
      %1008 = vst.msk [vmem:[#allocation3 + $0x8] sm:$0xf] %vm1006, %v1003
      %1009 = vst.msk [vmem:[#allocation3 + $0x10] sm:$0xf] %vm1006, %v1004
      %1010 = vst.msk [vmem:[#allocation3 + $0x18] sm:$0xf] %vm1006, %v1005
      %v1011 = vld [vmem:[%s931 + $0x1] sm:$0xff]
      %v1012 = vld [vmem:[%s931 + $0x11] sm:$0xff]
      %v1013 = vld [vmem:[%s931 + $0x21] sm:$0xff]
      %v1014 = vld [vmem:[%s931 + $0x31] sm:$0xff]
      %v1015 = vpack.c.bf16 %v1011, %v1011
      %v1016 = vpack.c.bf16 %v1012, %v1012
      %v1017 = vpack.c.bf16 %v1013, %v1013
      %v1018 = vpack.c.bf16 %v1014, %v1014
      %v1023 = vunpack.c.l.b16 %v1015
      %v1024 = vunpack.c.l.b16 %v1016
      %v1025 = vunpack.c.l.b16 %v1017
      %v1026 = vunpack.c.l.b16 %v1018
      %v1027 = vpack.c.b16 %v1023, %v1023
      %v1028 = vpack.c.b16 %v1024, %v1024
      %v1029 = vpack.c.b16 %v1025, %v1025
      %v1030 = vpack.c.b16 %v1026, %v1026
      %1031 = vrot.lane.b32.xlu0 %v1027, 16
      %v1032 = vpop.permute.xlu0 %1031
      %1033 = vrot.lane.b32.xlu0 %v1028, 16
      %v1034 = vpop.permute.xlu0 %1033
      %1035 = vrot.lane.b32.xlu0 %v1029, 16
      %v1036 = vpop.permute.xlu0 %1035
      %1037 = vrot.lane.b32.xlu0 %v1030, 16
      %v1038 = vpop.permute.xlu0 %1037
      %vm1043 = vcmask 257152
      %1044 = vst.msk [vmem:[#allocation3] sm:$0xf] %vm1043, %v1032
      %1045 = vst.msk [vmem:[#allocation3 + $0x8] sm:$0xf] %vm1043, %v1034
      %1046 = vst.msk [vmem:[#allocation3 + $0x10] sm:$0xf] %vm1043, %v1036
      %1047 = vst.msk [vmem:[#allocation3 + $0x18] sm:$0xf] %vm1043, %v1038
      %v1048 = vld [vmem:[%s931 + $0x2] sm:$0xff]
      %v1049 = vld [vmem:[%s931 + $0x12] sm:$0xff]
      %v1050 = vld [vmem:[%s931 + $0x22] sm:$0xff]
      %v1051 = vld [vmem:[%s931 + $0x32] sm:$0xff]
      %v1052 = vpack.c.bf16 %v1048, %v1048
      %v1053 = vpack.c.bf16 %v1049, %v1049
      %v1054 = vpack.c.bf16 %v1050, %v1050
      %v1055 = vpack.c.bf16 %v1051, %v1051
      %v1060 = vunpack.c.l.b16 %v1052
      %v1061 = vunpack.c.l.b16 %v1053
      %v1062 = vunpack.c.l.b16 %v1054
      %v1063 = vunpack.c.l.b16 %v1055
      %v1064 = vpack.c.b16 %v1060, %v1060
      %v1065 = vpack.c.b16 %v1061, %v1061
      %v1066 = vpack.c.b16 %v1062, %v1062
      %v1067 = vpack.c.b16 %v1063, %v1063
      %1068 = vrot.lane.b32.xlu0 %v1064, 32
      %v1069 = vpop.permute.xlu0 %1068
      %1070 = vrot.lane.b32.xlu0 %v1065, 32
      %v1071 = vpop.permute.xlu0 %1070
      %1072 = vrot.lane.b32.xlu0 %v1066, 32
      %v1073 = vpop.permute.xlu0 %1072
      %1074 = vrot.lane.b32.xlu0 %v1067, 32
      %v1075 = vpop.permute.xlu0 %1074
      %vm1080 = vcmask 388352
      %1081 = vst.msk [vmem:[#allocation3] sm:$0xf] %vm1080, %v1069
      %1082 = vst.msk [vmem:[#allocation3 + $0x8] sm:$0xf] %vm1080, %v1071
      %1083 = vst.msk [vmem:[#allocation3 + $0x10] sm:$0xf] %vm1080, %v1073
      %1084 = vst.msk [vmem:[#allocation3 + $0x18] sm:$0xf] %vm1080, %v1075
      %v1085 = vld [vmem:[%s802] sm:$0xff]
      %v1086 = vld [vmem:[%s802 + $0x10] sm:$0xff]
      %v1087 = vld [vmem:[%s802 + $0x20] sm:$0xff]
      %v1088 = vld [vmem:[%s802 + $0x30] sm:$0xff]
      %v1089 = vpack.c.bf16 %v1085, %v1085
      %v1090 = vpack.c.bf16 %v1086, %v1086
      %v1091 = vpack.c.bf16 %v1087, %v1087
      %v1092 = vpack.c.bf16 %v1088, %v1088
      %v1097 = vunpack.c.l.b16 %v1089
      %v1098 = vunpack.c.l.b16 %v1090
      %v1099 = vunpack.c.l.b16 %v1091
      %v1100 = vunpack.c.l.b16 %v1092
      %v1101 = vpack.c.b16 %v1097, %v1097
      %v1102 = vpack.c.b16 %v1098, %v1098
      %v1103 = vpack.c.b16 %v1099, %v1099
      %v1104 = vpack.c.b16 %v1100, %v1100
      %1105 = vrot.lane.b32.xlu0 %v1101, 48
      %v1106 = vpop.permute.xlu0 %1105
      %1107 = vrot.lane.b32.xlu0 %v1102, 48
      %v1108 = vpop.permute.xlu0 %1107
      %1109 = vrot.lane.b32.xlu0 %v1103, 48
      %v1110 = vpop.permute.xlu0 %1109
      %1111 = vrot.lane.b32.xlu0 %v1104, 48
      %v1112 = vpop.permute.xlu0 %1111
      %vm1117 = vcmask 519552
      %1118 = vst.msk [vmem:[#allocation3] sm:$0xf] %vm1117, %v1106
      %1119 = vst.msk [vmem:[#allocation3 + $0x8] sm:$0xf] %vm1117, %v1108
      %1120 = vst.msk [vmem:[#allocation3 + $0x10] sm:$0xf] %vm1117, %v1110
      %1121 = vst.msk [vmem:[#allocation3 + $0x18] sm:$0xf] %vm1117, %v1112
      %v1122 = vld [vmem:[%s802 + $0x1] sm:$0xff]
      %v1123 = vld [vmem:[%s802 + $0x11] sm:$0xff]
      %v1124 = vld [vmem:[%s802 + $0x21] sm:$0xff]
      %v1125 = vld [vmem:[%s802 + $0x31] sm:$0xff]
      %v1126 = vpack.c.bf16 %v1122, %v1122
      %v1127 = vpack.c.bf16 %v1123, %v1123
      %v1128 = vpack.c.bf16 %v1124, %v1124
      %v1129 = vpack.c.bf16 %v1125, %v1125
      %v1134 = vunpack.c.l.b16 %v1126
      %v1135 = vunpack.c.l.b16 %v1127
      %v1136 = vunpack.c.l.b16 %v1128
      %v1137 = vunpack.c.l.b16 %v1129
      %v1138 = vpack.c.b16 %v1134, %v1134
      %v1139 = vpack.c.b16 %v1135, %v1135
      %v1140 = vpack.c.b16 %v1136, %v1136
      %v1141 = vpack.c.b16 %v1137, %v1137
      %1142 = vrot.lane.b32.xlu0 %v1138, 64
      %v1143 = vpop.permute.xlu0 %1142
      %1144 = vrot.lane.b32.xlu0 %v1139, 64
      %v1145 = vpop.permute.xlu0 %1144
      %1146 = vrot.lane.b32.xlu0 %v1140, 64
      %v1147 = vpop.permute.xlu0 %1146
      %1148 = vrot.lane.b32.xlu0 %v1141, 64
      %v1149 = vpop.permute.xlu0 %1148
      %vm1154 = vcmask 650752
      %1155 = vst.msk [vmem:[#allocation3] sm:$0xf] %vm1154, %v1143
      %1156 = vst.msk [vmem:[#allocation3 + $0x8] sm:$0xf] %vm1154, %v1145
      %1157 = vst.msk [vmem:[#allocation3 + $0x10] sm:$0xf] %vm1154, %v1147
      %1158 = vst.msk [vmem:[#allocation3 + $0x18] sm:$0xf] %vm1154, %v1149
      %v1159 = vld [vmem:[%s802 + $0x2] sm:$0xff]
      %v1160 = vld [vmem:[%s802 + $0x12] sm:$0xff]
      %v1161 = vld [vmem:[%s802 + $0x22] sm:$0xff]
      %v1162 = vld [vmem:[%s802 + $0x32] sm:$0xff]
      %v1163 = vpack.c.bf16 %v1159, %v1159
      %v1164 = vpack.c.bf16 %v1160, %v1160
      %v1165 = vpack.c.bf16 %v1161, %v1161
      %v1166 = vpack.c.bf16 %v1162, %v1162
      %v1171 = vunpack.c.l.b16 %v1163
      %v1172 = vunpack.c.l.b16 %v1164
      %v1173 = vunpack.c.l.b16 %v1165
      %v1174 = vunpack.c.l.b16 %v1166
      %v1175 = vpack.c.b16 %v1171, %v1171
      %v1176 = vpack.c.b16 %v1172, %v1172
      %v1177 = vpack.c.b16 %v1173, %v1173
      %v1178 = vpack.c.b16 %v1174, %v1174
      %1179 = vrot.lane.b32.xlu0 %v1175, 80
      %v1180 = vpop.permute.xlu0 %1179
      %1181 = vrot.lane.b32.xlu0 %v1176, 80
      %v1182 = vpop.permute.xlu0 %1181
      %1183 = vrot.lane.b32.xlu0 %v1177, 80
      %v1184 = vpop.permute.xlu0 %1183
      %1185 = vrot.lane.b32.xlu0 %v1178, 80
      %v1186 = vpop.permute.xlu0 %1185
      %vm1191 = vcmask 781952
      %1192 = vst.msk [vmem:[#allocation3] sm:$0xf] %vm1191, %v1180
      %1193 = vst.msk [vmem:[#allocation3 + $0x8] sm:$0xf] %vm1191, %v1182
      %1194 = vst.msk [vmem:[#allocation3 + $0x10] sm:$0xf] %vm1191, %v1184
      %1195 = vst.msk [vmem:[#allocation3 + $0x18] sm:$0xf] %vm1191, %v1186
      %v1196 = vld [vmem:[%s849] sm:$0xff]
      %v1197 = vld [vmem:[%s849 + $0x10] sm:$0xff]
      %v1198 = vld [vmem:[%s849 + $0x20] sm:$0xff]
      %v1199 = vld [vmem:[%s849 + $0x30] sm:$0xff]
      %v1200 = vpack.c.bf16 %v1196, %v1196
      %v1201 = vpack.c.bf16 %v1197, %v1197
      %v1202 = vpack.c.bf16 %v1198, %v1198
      %v1203 = vpack.c.bf16 %v1199, %v1199
      %v1208 = vunpack.c.l.b16 %v1200
      %v1209 = vunpack.c.l.b16 %v1201
      %v1210 = vunpack.c.l.b16 %v1202
      %v1211 = vunpack.c.l.b16 %v1203
      %v1212 = vpack.c.b16 %v1208, %v1208
      %v1213 = vpack.c.b16 %v1209, %v1209
      %v1214 = vpack.c.b16 %v1210, %v1210
      %v1215 = vpack.c.b16 %v1211, %v1211
      %1216 = vrot.lane.b32.xlu0 %v1212, 96
      %v1217 = vpop.permute.xlu0 %1216
      %1218 = vrot.lane.b32.xlu0 %v1213, 96
      %v1219 = vpop.permute.xlu0 %1218
      %1220 = vrot.lane.b32.xlu0 %v1214, 96
      %v1221 = vpop.permute.xlu0 %1220
      %1222 = vrot.lane.b32.xlu0 %v1215, 96
      %v1223 = vpop.permute.xlu0 %1222
      %vm1228 = vcmask 913152
      %1229 = vst.msk [vmem:[#allocation3] sm:$0xf] %vm1228, %v1217
      %1230 = vst.msk [vmem:[#allocation3 + $0x8] sm:$0xf] %vm1228, %v1219
      %1231 = vst.msk [vmem:[#allocation3 + $0x10] sm:$0xf] %vm1228, %v1221
      %1232 = vst.msk [vmem:[#allocation3 + $0x18] sm:$0xf] %vm1228, %v1223
      %v1233 = vld [vmem:[%s849 + $0x1] sm:$0xff]
      %v1234 = vld [vmem:[%s849 + $0x11] sm:$0xff]
      %v1235 = vld [vmem:[%s849 + $0x21] sm:$0xff]
      %v1236 = vld [vmem:[%s849 + $0x31] sm:$0xff]
      %v1237 = vpack.c.bf16 %v1233, %v1233
      %v1238 = vpack.c.bf16 %v1234, %v1234
      %v1239 = vpack.c.bf16 %v1235, %v1235
      %v1240 = vpack.c.bf16 %v1236, %v1236
      %v1245 = vunpack.c.l.b16 %v1237
      %v1246 = vunpack.c.l.b16 %v1238
      %v1247 = vunpack.c.l.b16 %v1239
      %v1248 = vunpack.c.l.b16 %v1240
      %v1249 = vpack.c.b16 %v1245, %v1245
      %v1250 = vpack.c.b16 %v1246, %v1246
      %v1251 = vpack.c.b16 %v1247, %v1247
      %v1252 = vpack.c.b16 %v1248, %v1248
      %1253 = vrot.lane.b32.xlu0 %v1249, 112
      %v1254 = vpop.permute.xlu0 %1253
      %1255 = vrot.lane.b32.xlu0 %v1250, 112
      %v1256 = vpop.permute.xlu0 %1255
      %1257 = vrot.lane.b32.xlu0 %v1251, 112
      %v1258 = vpop.permute.xlu0 %1257
      %1259 = vrot.lane.b32.xlu0 %v1252, 112
      %v1260 = vpop.permute.xlu0 %1259
      %vm1265 = vcmask 1044352
      %1266 = vst.msk [vmem:[#allocation3] sm:$0xf] %vm1265, %v1254
      %1267 = vst.msk [vmem:[#allocation3 + $0x8] sm:$0xf] %vm1265, %v1256
      %1268 = vst.msk [vmem:[#allocation3 + $0x10] sm:$0xf] %vm1265, %v1258
      %1269 = vst.msk [vmem:[#allocation3 + $0x18] sm:$0xf] %vm1265, %v1260
      %v1270 = vld [vmem:[%s849 + $0x2] sm:$0xff]
      %v1271 = vld [vmem:[%s849 + $0x12] sm:$0xff]
      %v1272 = vld [vmem:[%s849 + $0x22] sm:$0xff]
      %v1273 = vld [vmem:[%s849 + $0x32] sm:$0xff]
      %v1274 = vpack.c.bf16 %v1270, %v1270
      %v1275 = vpack.c.bf16 %v1271, %v1271
      %v1276 = vpack.c.bf16 %v1272, %v1272
      %v1277 = vpack.c.bf16 %v1273, %v1273
      %1278 = vst.msk [vmem:[#allocation3 + $0x4] sm:$0xf] %vm1006, %v1274
      %1279 = vst.msk [vmem:[#allocation3 + $0xc] sm:$0xf] %vm1006, %v1275
      %1280 = vst.msk [vmem:[#allocation3 + $0x14] sm:$0xf] %vm1006, %v1276
      %1281 = vst.msk [vmem:[#allocation3 + $0x1c] sm:$0xf] %vm1006, %v1277
      %v1282 = vld [vmem:[#allocation3] sm:$0xff]
      %v1283 = vld [vmem:[#allocation3 + $0x8] sm:$0xff]
      %v1284 = vld [vmem:[#allocation3 + $0x10] sm:$0xff]
      %v1285 = vld [vmem:[#allocation3 + $0x18] sm:$0xff]
      %v1286 = vld [vmem:[%s8] sm:$0xf]
      %v1287 = vld [vmem:[%s8 + $0x4] sm:$0xf]
      %v1288 = vld [vmem:[%s8 + $0x8] sm:$0xf]
      %v1289 = vld [vmem:[%s8 + $0xc] sm:$0xf]
      %v1290 = vld [vmem:[%s8 + $0x10] sm:$0xf]
      %v1291 = vld [vmem:[%s8 + $0x14] sm:$0xf]
      %v1292 = vld [vmem:[%s8 + $0x18] sm:$0xf]
      %v1293 = vld [vmem:[%s8 + $0x1c] sm:$0xf]
      %v1294 = vld [vmem:[%s8 + $0x20] sm:$0xf]
      %v1295 = vld [vmem:[%s8 + $0x24] sm:$0xf]
      %v1296 = vld [vmem:[%s8 + $0x28] sm:$0xf]
      %v1297 = vld [vmem:[%s8 + $0x2c] sm:$0xf]
      %v1298 = vld [vmem:[%s8 + $0x30] sm:$0xf]
      %v1299 = vld [vmem:[%s8 + $0x34] sm:$0xf]
      %v1300 = vld [vmem:[%s8 + $0x38] sm:$0xf]
      %v1301 = vld [vmem:[%s8 + $0x3c] sm:$0xf]
      %v1302 = vld [vmem:[%s8 + $0x40] sm:$0xf]
      %v1303 = vld [vmem:[%s8 + $0x44] sm:$0xf]
      %v1304 = vld [vmem:[%s9] sm:$0x1]
      %v1306 = vlaneseq
      %v1307 = vshrl.u32 %v1306, 7
      %v1308 = vsub.s32 0, %v1307
      %v1309 = vrot.slane %v1304, %v1308
      %v1315 = vunpack.c.l.b16 %v1282
      %v1316 = vunpack.c.h.b16 %v1282
      %v1317 = vunpack.c.l.b16 %v1283
      %v1318 = vunpack.c.h.b16 %v1283
      %v1319 = vunpack.c.l.b16 %v1284
      %v1320 = vunpack.c.h.b16 %v1284
      %v1321 = vunpack.c.l.b16 %v1285
      %v1322 = vunpack.c.h.b16 %v1285
      %v1323 = vpack.c.b16 %v1317, %v1315
      %v1324 = vpack.c.b16 %v1318, %v1316
      %v1325 = vpack.c.b16 %v1321, %v1319
      %v1326 = vpack.c.b16 %v1322, %v1320
      %v1347 = vunpack.c.l.b16 %v1286
      %v1348 = vunpack.c.l.b16 %v1287
      %v1349 = vunpack.c.l.b16 %v1288
      %v1350 = vunpack.c.l.b16 %v1289
      %v1351 = vunpack.c.l.b16 %v1290
      %v1352 = vunpack.c.l.b16 %v1291
      %v1353 = vunpack.c.l.b16 %v1292
      %v1354 = vunpack.c.l.b16 %v1293
      %v1355 = vunpack.c.l.b16 %v1294
      %v1356 = vunpack.c.l.b16 %v1295
      %v1357 = vunpack.c.l.b16 %v1296
      %v1358 = vunpack.c.l.b16 %v1297
      %v1359 = vunpack.c.l.b16 %v1298
      %v1360 = vunpack.c.l.b16 %v1299
      %v1361 = vunpack.c.l.b16 %v1300
      %v1362 = vunpack.c.l.b16 %v1301
      %v1363 = vunpack.c.l.b16 %v1302
      %v1364 = vunpack.c.l.b16 %v1303
      %v1365 = vpack.c.b16 %v1348, %v1347
      %v1366 = vpack.c.b16 %v1350, %v1349
      %v1367 = vpack.c.b16 %v1352, %v1351
      %v1368 = vpack.c.b16 %v1354, %v1353
      %v1369 = vpack.c.b16 %v1356, %v1355
      %v1370 = vpack.c.b16 %v1358, %v1357
      %v1371 = vpack.c.b16 %v1360, %v1359
      %v1372 = vpack.c.b16 %v1362, %v1361
      %v1373 = vpack.c.b16 %v1364, %v1363
      %v1384 = vsel %vm803, %v1324, 0
      %v1387 = vsel %vm803, %v1326, 0
      %1389 = vmatprep.subr.bf16.mxu0 0
      %1390 = vmatpush1.bf16.msra.mxu0 %v1365
      %1391 = vmatprep.subr.bf16.mxu0 0
      %1392 = vmatpush1.bf16.msra.mxu0 %v1366
      %1393 = vmatprep.subr.bf16.mxu0 0
      %1394 = vmatpush1.bf16.msra.mxu0 %v1367
      %1395 = vmatprep.subr.bf16.mxu0 0
      %1396 = vmatpush1.bf16.msra.mxu0 %v1368
      %1397 = vmatprep.subr.bf16.mxu0 0
      %1398 = vmatpush1.bf16.msra.mxu0 %v1369
      %1399 = vmatprep.subr.bf16.mxu0 0
      %1400 = vmatpush1.bf16.msra.mxu0 %v1370
      %1401 = vmatprep.subr.bf16.mxu0 0
      %1402 = vmatpush1.bf16.msra.mxu0 %v1371
      %1403 = vmatprep.subr.bf16.mxu0 0
      %1404 = vmatpush1.bf16.msra.mxu0 %v1372
      %1405 = vmatprep.subr.bf16.mxu0 0
      %1406 = vmatpush1.bf16.msra.mxu0 %v1373
      %1407 = vmatprep.subr.bf16.mxu0 0
      %1408 = vmatpush1.bf16.msra.mxu0 0
      %1409 = vmatprep.subr.bf16.mxu0 0
      %1410 = vmatpush1.bf16.msra.mxu0 0
      %1411 = vmatprep.subr.bf16.mxu0 0
      %1412 = vmatpush1.bf16.msra.mxu0 0
      %1413 = vmatprep.subr.bf16.mxu0 0
      %1414 = vmatpush1.bf16.msra.mxu0 0
      %1415 = vmatprep.subr.bf16.mxu0 0
      %1416 = vmatpush1.bf16.msra.mxu0 0
      %1417 = vmatprep.subr.bf16.mxu0 0
      %1418 = vmatpush1.bf16.msra.mxu0 0
      %1419 = vmatprep.subr.bf16.mxu0 0
      %1420 = vmatpush1.bf16.msra.mxu0 0
      %1421 = vmatprep.mubr.bf16.mxu0 %v1384
      %1422 = vmatmul.mubr.bf16.gmra.mrb[0].mxu0 %v1323
      %v1423 = vpop.f32.mrb[0].mxu0
      %v1424 = vadd.f32 %v1309, %v1423
      %v1425 = vpop.f32.mrb[0].mxu0
      %v1426 = vpop.f32.mrb[0].mxu0
      %v1427 = vadd.f32 %v1309, %v1426
      %v1428 = vpop.f32.mrb[0].mxu0
      %1429 = vmatprep.mubr.bf16.mxu0 %v1387
      %1430 = vmatmul.mubr.bf16.gmra.mrb[0].mxu0 %v1325
      %v1431 = vpop.f32.mrb[0].mxu0
      %v1432 = vadd.f32 %v1309, %v1431
      %v1433 = vpop.f32.mrb[0].mxu0
      %v1434 = vpop.f32.mrb[0].mxu0
      %v1435 = vadd.f32 %v1309, %v1434
      %v1436 = vpop.f32.mrb[0].mxu0
      %1437 = vdwg.mxu0
      %vm1438 = vcmp.gt.f32.partialorder %v1424, 0.0
      %vm1439 = vcmp.gt.f32.partialorder %v1427, 0.0
      %vm1440 = vcmp.gt.f32.partialorder %v1432, 0.0
      %vm1441 = vcmp.gt.f32.partialorder %v1435, 0.0
      %v1442 = vmul.f32 %v1424, 0.01
      %v1443 = vmul.f32 %v1427, 0.01
      %v1444 = vmul.f32 %v1432, 0.01
      %v1445 = vmul.f32 %v1435, 0.01
      %v1446 = vsel %vm1438, %v1424, %v1442
      %v1447 = vsel %vm1439, %v1427, %v1443
      %v1448 = vsel %vm1440, %v1432, %v1444
      %v1449 = vsel %vm1441, %v1435, %v1445
      %1450 = vst.msk [vmem:[%s680] sm:$0xff] %vm803, %v1446
      %1451 = vst.msk [vmem:[%s680 + $0x10] sm:$0xff] %vm803, %v1447
      %1452 = vst.msk [vmem:[%s680 + $0x20] sm:$0xff] %vm803, %v1448
      %1453 = vst.msk [vmem:[%s680 + $0x30] sm:$0xff] %vm803, %v1449
      %v1454 = vld [vmem:[%s802] sm:$0xff]
      %v1455 = vld [vmem:[%s802 + $0x10] sm:$0xff]
      %v1456 = vld [vmem:[%s802 + $0x20] sm:$0xff]
      %v1457 = vld [vmem:[%s802 + $0x30] sm:$0xff]
      %v1458 = vpack.c.bf16 %v1454, %v1454
      %v1459 = vpack.c.bf16 %v1455, %v1455
      %v1460 = vpack.c.bf16 %v1456, %v1456
      %v1461 = vpack.c.bf16 %v1457, %v1457
      %1462 = vst.msk [vmem:[#allocation3] sm:$0xf] %vm1006, %v1458
      %1463 = vst.msk [vmem:[#allocation3 + $0x8] sm:$0xf] %vm1006, %v1459
      %1464 = vst.msk [vmem:[#allocation3 + $0x10] sm:$0xf] %vm1006, %v1460
      %1465 = vst.msk [vmem:[#allocation3 + $0x18] sm:$0xf] %vm1006, %v1461
      %v1466 = vld [vmem:[%s802 + $0x1] sm:$0xff]
      %v1467 = vld [vmem:[%s802 + $0x11] sm:$0xff]
      %v1468 = vld [vmem:[%s802 + $0x21] sm:$0xff]
      %v1469 = vld [vmem:[%s802 + $0x31] sm:$0xff]
      %v1470 = vpack.c.bf16 %v1466, %v1466
      %v1471 = vpack.c.bf16 %v1467, %v1467
      %v1472 = vpack.c.bf16 %v1468, %v1468
      %v1473 = vpack.c.bf16 %v1469, %v1469
      %v1478 = vunpack.c.l.b16 %v1470
      %v1479 = vunpack.c.l.b16 %v1471
      %v1480 = vunpack.c.l.b16 %v1472
      %v1481 = vunpack.c.l.b16 %v1473
      %v1482 = vpack.c.b16 %v1478, %v1478
      %v1483 = vpack.c.b16 %v1479, %v1479
      %v1484 = vpack.c.b16 %v1480, %v1480
      %v1485 = vpack.c.b16 %v1481, %v1481
      %1486 = vrot.lane.b32.xlu0 %v1482, 16
      %v1487 = vpop.permute.xlu0 %1486
      %1488 = vrot.lane.b32.xlu0 %v1483, 16
      %v1489 = vpop.permute.xlu0 %1488
      %1490 = vrot.lane.b32.xlu0 %v1484, 16
      %v1491 = vpop.permute.xlu0 %1490
      %1492 = vrot.lane.b32.xlu0 %v1485, 16
      %v1493 = vpop.permute.xlu0 %1492
      %1498 = vst.msk [vmem:[#allocation3] sm:$0xf] %vm1043, %v1487
      %1499 = vst.msk [vmem:[#allocation3 + $0x8] sm:$0xf] %vm1043, %v1489
      %1500 = vst.msk [vmem:[#allocation3 + $0x10] sm:$0xf] %vm1043, %v1491
      %1501 = vst.msk [vmem:[#allocation3 + $0x18] sm:$0xf] %vm1043, %v1493
      %v1502 = vld [vmem:[%s802 + $0x2] sm:$0xff]
      %v1503 = vld [vmem:[%s802 + $0x12] sm:$0xff]
      %v1504 = vld [vmem:[%s802 + $0x22] sm:$0xff]
      %v1505 = vld [vmem:[%s802 + $0x32] sm:$0xff]
      %v1506 = vpack.c.bf16 %v1502, %v1502
      %v1507 = vpack.c.bf16 %v1503, %v1503
      %v1508 = vpack.c.bf16 %v1504, %v1504
      %v1509 = vpack.c.bf16 %v1505, %v1505
      %v1514 = vunpack.c.l.b16 %v1506
      %v1515 = vunpack.c.l.b16 %v1507
      %v1516 = vunpack.c.l.b16 %v1508
      %v1517 = vunpack.c.l.b16 %v1509
      %v1518 = vpack.c.b16 %v1514, %v1514
      %v1519 = vpack.c.b16 %v1515, %v1515
      %v1520 = vpack.c.b16 %v1516, %v1516
      %v1521 = vpack.c.b16 %v1517, %v1517
      %1522 = vrot.lane.b32.xlu0 %v1518, 32
      %v1523 = vpop.permute.xlu0 %1522
      %1524 = vrot.lane.b32.xlu0 %v1519, 32
      %v1525 = vpop.permute.xlu0 %1524
      %1526 = vrot.lane.b32.xlu0 %v1520, 32
      %v1527 = vpop.permute.xlu0 %1526
      %1528 = vrot.lane.b32.xlu0 %v1521, 32
      %v1529 = vpop.permute.xlu0 %1528
      %1534 = vst.msk [vmem:[#allocation3] sm:$0xf] %vm1080, %v1523
      %1535 = vst.msk [vmem:[#allocation3 + $0x8] sm:$0xf] %vm1080, %v1525
      %1536 = vst.msk [vmem:[#allocation3 + $0x10] sm:$0xf] %vm1080, %v1527
      %1537 = vst.msk [vmem:[#allocation3 + $0x18] sm:$0xf] %vm1080, %v1529
      %v1538 = vld [vmem:[%s849] sm:$0xff]
      %v1539 = vld [vmem:[%s849 + $0x10] sm:$0xff]
      %v1540 = vld [vmem:[%s849 + $0x20] sm:$0xff]
      %v1541 = vld [vmem:[%s849 + $0x30] sm:$0xff]
      %v1542 = vpack.c.bf16 %v1538, %v1538
      %v1543 = vpack.c.bf16 %v1539, %v1539
      %v1544 = vpack.c.bf16 %v1540, %v1540
      %v1545 = vpack.c.bf16 %v1541, %v1541
      %v1550 = vunpack.c.l.b16 %v1542
      %v1551 = vunpack.c.l.b16 %v1543
      %v1552 = vunpack.c.l.b16 %v1544
      %v1553 = vunpack.c.l.b16 %v1545
      %v1554 = vpack.c.b16 %v1550, %v1550
      %v1555 = vpack.c.b16 %v1551, %v1551
      %v1556 = vpack.c.b16 %v1552, %v1552
      %v1557 = vpack.c.b16 %v1553, %v1553
      %1558 = vrot.lane.b32.xlu0 %v1554, 48
      %v1559 = vpop.permute.xlu0 %1558
      %1560 = vrot.lane.b32.xlu0 %v1555, 48
      %v1561 = vpop.permute.xlu0 %1560
      %1562 = vrot.lane.b32.xlu0 %v1556, 48
      %v1563 = vpop.permute.xlu0 %1562
      %1564 = vrot.lane.b32.xlu0 %v1557, 48
      %v1565 = vpop.permute.xlu0 %1564
      %1570 = vst.msk [vmem:[#allocation3] sm:$0xf] %vm1117, %v1559
      %1571 = vst.msk [vmem:[#allocation3 + $0x8] sm:$0xf] %vm1117, %v1561
      %1572 = vst.msk [vmem:[#allocation3 + $0x10] sm:$0xf] %vm1117, %v1563
      %1573 = vst.msk [vmem:[#allocation3 + $0x18] sm:$0xf] %vm1117, %v1565
      %v1574 = vld [vmem:[%s849 + $0x1] sm:$0xff]
      %v1575 = vld [vmem:[%s849 + $0x11] sm:$0xff]
      %v1576 = vld [vmem:[%s849 + $0x21] sm:$0xff]
      %v1577 = vld [vmem:[%s849 + $0x31] sm:$0xff]
      %v1578 = vpack.c.bf16 %v1574, %v1574
      %v1579 = vpack.c.bf16 %v1575, %v1575
      %v1580 = vpack.c.bf16 %v1576, %v1576
      %v1581 = vpack.c.bf16 %v1577, %v1577
      %v1586 = vunpack.c.l.b16 %v1578
      %v1587 = vunpack.c.l.b16 %v1579
      %v1588 = vunpack.c.l.b16 %v1580
      %v1589 = vunpack.c.l.b16 %v1581
      %v1590 = vpack.c.b16 %v1586, %v1586
      %v1591 = vpack.c.b16 %v1587, %v1587
      %v1592 = vpack.c.b16 %v1588, %v1588
      %v1593 = vpack.c.b16 %v1589, %v1589
      %1594 = vrot.lane.b32.xlu0 %v1590, 64
      %v1595 = vpop.permute.xlu0 %1594
      %1596 = vrot.lane.b32.xlu0 %v1591, 64
      %v1597 = vpop.permute.xlu0 %1596
      %1598 = vrot.lane.b32.xlu0 %v1592, 64
      %v1599 = vpop.permute.xlu0 %1598
      %1600 = vrot.lane.b32.xlu0 %v1593, 64
      %v1601 = vpop.permute.xlu0 %1600
      %1606 = vst.msk [vmem:[#allocation3] sm:$0xf] %vm1154, %v1595
      %1607 = vst.msk [vmem:[#allocation3 + $0x8] sm:$0xf] %vm1154, %v1597
      %1608 = vst.msk [vmem:[#allocation3 + $0x10] sm:$0xf] %vm1154, %v1599
      %1609 = vst.msk [vmem:[#allocation3 + $0x18] sm:$0xf] %vm1154, %v1601
      %v1610 = vld [vmem:[%s849 + $0x2] sm:$0xff]
      %v1611 = vld [vmem:[%s849 + $0x12] sm:$0xff]
      %v1612 = vld [vmem:[%s849 + $0x22] sm:$0xff]
      %v1613 = vld [vmem:[%s849 + $0x32] sm:$0xff]
      %v1614 = vpack.c.bf16 %v1610, %v1610
      %v1615 = vpack.c.bf16 %v1611, %v1611
      %v1616 = vpack.c.bf16 %v1612, %v1612
      %v1617 = vpack.c.bf16 %v1613, %v1613
      %v1622 = vunpack.c.l.b16 %v1614
      %v1623 = vunpack.c.l.b16 %v1615
      %v1624 = vunpack.c.l.b16 %v1616
      %v1625 = vunpack.c.l.b16 %v1617
      %v1626 = vpack.c.b16 %v1622, %v1622
      %v1627 = vpack.c.b16 %v1623, %v1623
      %v1628 = vpack.c.b16 %v1624, %v1624
      %v1629 = vpack.c.b16 %v1625, %v1625
      %1630 = vrot.lane.b32.xlu0 %v1626, 80
      %v1631 = vpop.permute.xlu0 %1630
      %1632 = vrot.lane.b32.xlu0 %v1627, 80
      %v1633 = vpop.permute.xlu0 %1632
      %1634 = vrot.lane.b32.xlu0 %v1628, 80
      %v1635 = vpop.permute.xlu0 %1634
      %1636 = vrot.lane.b32.xlu0 %v1629, 80
      %v1637 = vpop.permute.xlu0 %1636
      %1642 = vst.msk [vmem:[#allocation3] sm:$0xf] %vm1191, %v1631
      %1643 = vst.msk [vmem:[#allocation3 + $0x8] sm:$0xf] %vm1191, %v1633
      %1644 = vst.msk [vmem:[#allocation3 + $0x10] sm:$0xf] %vm1191, %v1635
      %1645 = vst.msk [vmem:[#allocation3 + $0x18] sm:$0xf] %vm1191, %v1637
      %s1646 = scalar_lea.vmem [#allocation2], 32
      %v1647 = vld [vmem:[%s1646] sm:$0xff]
      %v1648 = vld [vmem:[%s1646 + $0x10] sm:$0xff]
      %v1649 = vld [vmem:[%s1646 + $0x20] sm:$0xff]
      %v1650 = vld [vmem:[%s1646 + $0x30] sm:$0xff]
      %v1651 = vpack.c.bf16 %v1647, %v1647
      %v1652 = vpack.c.bf16 %v1648, %v1648
      %v1653 = vpack.c.bf16 %v1649, %v1649
      %v1654 = vpack.c.bf16 %v1650, %v1650
      %v1659 = vunpack.c.l.b16 %v1651
      %v1660 = vunpack.c.l.b16 %v1652
      %v1661 = vunpack.c.l.b16 %v1653
      %v1662 = vunpack.c.l.b16 %v1654
      %v1663 = vpack.c.b16 %v1659, %v1659
      %v1664 = vpack.c.b16 %v1660, %v1660
      %v1665 = vpack.c.b16 %v1661, %v1661
      %v1666 = vpack.c.b16 %v1662, %v1662
      %1667 = vrot.lane.b32.xlu0 %v1663, 96
      %v1668 = vpop.permute.xlu0 %1667
      %1669 = vrot.lane.b32.xlu0 %v1664, 96
      %v1670 = vpop.permute.xlu0 %1669
      %1671 = vrot.lane.b32.xlu0 %v1665, 96
      %v1672 = vpop.permute.xlu0 %1671
      %1673 = vrot.lane.b32.xlu0 %v1666, 96
      %v1674 = vpop.permute.xlu0 %1673
      %1679 = vst.msk [vmem:[#allocation3] sm:$0xf] %vm1228, %v1668
      %1680 = vst.msk [vmem:[#allocation3 + $0x8] sm:$0xf] %vm1228, %v1670
      %1681 = vst.msk [vmem:[#allocation3 + $0x10] sm:$0xf] %vm1228, %v1672
      %1682 = vst.msk [vmem:[#allocation3 + $0x18] sm:$0xf] %vm1228, %v1674
      %v1683 = vld [vmem:[%s1646 + $0x1] sm:$0xff]
      %v1684 = vld [vmem:[%s1646 + $0x11] sm:$0xff]
      %v1685 = vld [vmem:[%s1646 + $0x21] sm:$0xff]
      %v1686 = vld [vmem:[%s1646 + $0x31] sm:$0xff]
      %v1687 = vpack.c.bf16 %v1683, %v1683
      %v1688 = vpack.c.bf16 %v1684, %v1684
      %v1689 = vpack.c.bf16 %v1685, %v1685
      %v1690 = vpack.c.bf16 %v1686, %v1686
      %v1695 = vunpack.c.l.b16 %v1687
      %v1696 = vunpack.c.l.b16 %v1688
      %v1697 = vunpack.c.l.b16 %v1689
      %v1698 = vunpack.c.l.b16 %v1690
      %v1699 = vpack.c.b16 %v1695, %v1695
      %v1700 = vpack.c.b16 %v1696, %v1696
      %v1701 = vpack.c.b16 %v1697, %v1697
      %v1702 = vpack.c.b16 %v1698, %v1698
      %1703 = vrot.lane.b32.xlu0 %v1699, 112
      %v1704 = vpop.permute.xlu0 %1703
      %1705 = vrot.lane.b32.xlu0 %v1700, 112
      %v1706 = vpop.permute.xlu0 %1705
      %1707 = vrot.lane.b32.xlu0 %v1701, 112
      %v1708 = vpop.permute.xlu0 %1707
      %1709 = vrot.lane.b32.xlu0 %v1702, 112
      %v1710 = vpop.permute.xlu0 %1709
      %1715 = vst.msk [vmem:[#allocation3] sm:$0xf] %vm1265, %v1704
      %1716 = vst.msk [vmem:[#allocation3 + $0x8] sm:$0xf] %vm1265, %v1706
      %1717 = vst.msk [vmem:[#allocation3 + $0x10] sm:$0xf] %vm1265, %v1708
      %1718 = vst.msk [vmem:[#allocation3 + $0x18] sm:$0xf] %vm1265, %v1710
      %v1719 = vld [vmem:[%s1646 + $0x2] sm:$0xff]
      %v1720 = vld [vmem:[%s1646 + $0x12] sm:$0xff]
      %v1721 = vld [vmem:[%s1646 + $0x22] sm:$0xff]
      %v1722 = vld [vmem:[%s1646 + $0x32] sm:$0xff]
      %v1723 = vpack.c.bf16 %v1719, %v1719
      %v1724 = vpack.c.bf16 %v1720, %v1720
      %v1725 = vpack.c.bf16 %v1721, %v1721
      %v1726 = vpack.c.bf16 %v1722, %v1722
      %1727 = vst.msk [vmem:[#allocation3 + $0x4] sm:$0xf] %vm1006, %v1723
      %1728 = vst.msk [vmem:[#allocation3 + $0xc] sm:$0xf] %vm1006, %v1724
      %1729 = vst.msk [vmem:[#allocation3 + $0x14] sm:$0xf] %vm1006, %v1725
      %1730 = vst.msk [vmem:[#allocation3 + $0x1c] sm:$0xf] %vm1006, %v1726
      %v1731 = vld [vmem:[#allocation3] sm:$0xff]
      %v1732 = vld [vmem:[#allocation3 + $0x8] sm:$0xff]
      %v1733 = vld [vmem:[#allocation3 + $0x10] sm:$0xff]
      %v1734 = vld [vmem:[#allocation3 + $0x18] sm:$0xff]
      %v1735 = vld [vmem:[%s8] sm:$0xf]
      %v1736 = vld [vmem:[%s8 + $0x4] sm:$0xf]
      %v1737 = vld [vmem:[%s8 + $0x8] sm:$0xf]
      %v1738 = vld [vmem:[%s8 + $0xc] sm:$0xf]
      %v1739 = vld [vmem:[%s8 + $0x10] sm:$0xf]
      %v1740 = vld [vmem:[%s8 + $0x14] sm:$0xf]
      %v1741 = vld [vmem:[%s8 + $0x18] sm:$0xf]
      %v1742 = vld [vmem:[%s8 + $0x1c] sm:$0xf]
      %v1743 = vld [vmem:[%s8 + $0x20] sm:$0xf]
      %v1744 = vld [vmem:[%s8 + $0x24] sm:$0xf]
      %v1745 = vld [vmem:[%s8 + $0x28] sm:$0xf]
      %v1746 = vld [vmem:[%s8 + $0x2c] sm:$0xf]
      %v1747 = vld [vmem:[%s8 + $0x30] sm:$0xf]
      %v1748 = vld [vmem:[%s8 + $0x34] sm:$0xf]
      %v1749 = vld [vmem:[%s8 + $0x38] sm:$0xf]
      %v1750 = vld [vmem:[%s8 + $0x3c] sm:$0xf]
      %v1751 = vld [vmem:[%s8 + $0x40] sm:$0xf]
      %v1752 = vld [vmem:[%s8 + $0x44] sm:$0xf]
      %v1753 = vld [vmem:[%s9] sm:$0x1]
      %v1755 = vlaneseq
      %v1756 = vshrl.u32 %v1755, 7
      %v1757 = vsub.s32 0, %v1756
      %v1758 = vrot.slane %v1753, %v1757
      %v1764 = vunpack.c.l.b16 %v1731
      %v1765 = vunpack.c.h.b16 %v1731
      %v1766 = vunpack.c.l.b16 %v1732
      %v1767 = vunpack.c.h.b16 %v1732
      %v1768 = vunpack.c.l.b16 %v1733
      %v1769 = vunpack.c.h.b16 %v1733
      %v1770 = vunpack.c.l.b16 %v1734
      %v1771 = vunpack.c.h.b16 %v1734
      %v1772 = vpack.c.b16 %v1766, %v1764
      %v1773 = vpack.c.b16 %v1767, %v1765
      %v1774 = vpack.c.b16 %v1770, %v1768
      %v1775 = vpack.c.b16 %v1771, %v1769
      %v1796 = vunpack.c.l.b16 %v1735
      %v1797 = vunpack.c.l.b16 %v1736
      %v1798 = vunpack.c.l.b16 %v1737
      %v1799 = vunpack.c.l.b16 %v1738
      %v1800 = vunpack.c.l.b16 %v1739
      %v1801 = vunpack.c.l.b16 %v1740
      %v1802 = vunpack.c.l.b16 %v1741
      %v1803 = vunpack.c.l.b16 %v1742
      %v1804 = vunpack.c.l.b16 %v1743
      %v1805 = vunpack.c.l.b16 %v1744
      %v1806 = vunpack.c.l.b16 %v1745
      %v1807 = vunpack.c.l.b16 %v1746
      %v1808 = vunpack.c.l.b16 %v1747
      %v1809 = vunpack.c.l.b16 %v1748
      %v1810 = vunpack.c.l.b16 %v1749
      %v1811 = vunpack.c.l.b16 %v1750
      %v1812 = vunpack.c.l.b16 %v1751
      %v1813 = vunpack.c.l.b16 %v1752
      %v1814 = vpack.c.b16 %v1797, %v1796
      %v1815 = vpack.c.b16 %v1799, %v1798
      %v1816 = vpack.c.b16 %v1801, %v1800
      %v1817 = vpack.c.b16 %v1803, %v1802
      %v1818 = vpack.c.b16 %v1805, %v1804
      %v1819 = vpack.c.b16 %v1807, %v1806
      %v1820 = vpack.c.b16 %v1809, %v1808
      %v1821 = vpack.c.b16 %v1811, %v1810
      %v1822 = vpack.c.b16 %v1813, %v1812
      %v1833 = vsel %vm803, %v1773, 0
      %v1836 = vsel %vm803, %v1775, 0
      %1838 = vmatprep.subr.bf16.mxu0 0
      %1839 = vmatpush1.bf16.msra.mxu0 %v1814
      %1840 = vmatprep.subr.bf16.mxu0 0
      %1841 = vmatpush1.bf16.msra.mxu0 %v1815
      %1842 = vmatprep.subr.bf16.mxu0 0
      %1843 = vmatpush1.bf16.msra.mxu0 %v1816
      %1844 = vmatprep.subr.bf16.mxu0 0
      %1845 = vmatpush1.bf16.msra.mxu0 %v1817
      %1846 = vmatprep.subr.bf16.mxu0 0
      %1847 = vmatpush1.bf16.msra.mxu0 %v1818
      %1848 = vmatprep.subr.bf16.mxu0 0
      %1849 = vmatpush1.bf16.msra.mxu0 %v1819
      %1850 = vmatprep.subr.bf16.mxu0 0
      %1851 = vmatpush1.bf16.msra.mxu0 %v1820
      %1852 = vmatprep.subr.bf16.mxu0 0
      %1853 = vmatpush1.bf16.msra.mxu0 %v1821
      %1854 = vmatprep.subr.bf16.mxu0 0
      %1855 = vmatpush1.bf16.msra.mxu0 %v1822
      %1856 = vmatprep.subr.bf16.mxu0 0
      %1857 = vmatpush1.bf16.msra.mxu0 0
      %1858 = vmatprep.subr.bf16.mxu0 0
      %1859 = vmatpush1.bf16.msra.mxu0 0
      %1860 = vmatprep.subr.bf16.mxu0 0
      %1861 = vmatpush1.bf16.msra.mxu0 0
      %1862 = vmatprep.subr.bf16.mxu0 0
      %1863 = vmatpush1.bf16.msra.mxu0 0
      %1864 = vmatprep.subr.bf16.mxu0 0
      %1865 = vmatpush1.bf16.msra.mxu0 0
      %1866 = vmatprep.subr.bf16.mxu0 0
      %1867 = vmatpush1.bf16.msra.mxu0 0
      %1868 = vmatprep.subr.bf16.mxu0 0
      %1869 = vmatpush1.bf16.msra.mxu0 0
      %1870 = vmatprep.mubr.bf16.mxu0 %v1833
      %1871 = vmatmul.mubr.bf16.gmra.mrb[0].mxu0 %v1772
      %v1872 = vpop.f32.mrb[0].mxu0
      %v1873 = vadd.f32 %v1758, %v1872
      %v1874 = vpop.f32.mrb[0].mxu0
      %v1875 = vpop.f32.mrb[0].mxu0
      %v1876 = vadd.f32 %v1758, %v1875
      %v1877 = vpop.f32.mrb[0].mxu0
      %1878 = vmatprep.mubr.bf16.mxu0 %v1836
      %1879 = vmatmul.mubr.bf16.gmra.mrb[0].mxu0 %v1774
      %v1880 = vpop.f32.mrb[0].mxu0
      %v1881 = vadd.f32 %v1758, %v1880
      %v1882 = vpop.f32.mrb[0].mxu0
      %v1883 = vpop.f32.mrb[0].mxu0
      %v1884 = vadd.f32 %v1758, %v1883
      %v1885 = vpop.f32.mrb[0].mxu0
      %1886 = vdwg.mxu0
      %vm1887 = vcmp.gt.f32.partialorder %v1873, 0.0
      %vm1888 = vcmp.gt.f32.partialorder %v1876, 0.0
      %vm1889 = vcmp.gt.f32.partialorder %v1881, 0.0
      %vm1890 = vcmp.gt.f32.partialorder %v1884, 0.0
      %v1891 = vmul.f32 %v1873, 0.01
      %v1892 = vmul.f32 %v1876, 0.01
      %v1893 = vmul.f32 %v1881, 0.01
      %v1894 = vmul.f32 %v1884, 0.01
      %v1895 = vsel %vm1887, %v1873, %v1891
      %v1896 = vsel %vm1888, %v1876, %v1892
      %v1897 = vsel %vm1889, %v1881, %v1893
      %v1898 = vsel %vm1890, %v1884, %v1894
      %s1899 = scalar_lea.vmem %s680, 8
      %1900 = vst.msk [vmem:[%s1899] sm:$0xff] %vm803, %v1895
      %1901 = vst.msk [vmem:[%s1899 + $0x10] sm:$0xff] %vm803, %v1896
      %1902 = vst.msk [vmem:[%s1899 + $0x20] sm:$0xff] %vm803, %v1897
      %1903 = vst.msk [vmem:[%s1899 + $0x30] sm:$0xff] %vm803, %v1898
      %s1904 = smul.u32 4, %s26
      %p1905 = scmp.lt.s32.totalorder %s25, 1
      %s1906 = scalar_select %p1905, %s25, 1
      %p1907 = scmp.lt.s32.totalorder %s1904, 7
      %s1908 = scalar_select %p1907, %s1904, 7
      %s1909 = smul.addr %s1908, 2
      %s1910 = smul.addr %s1906, 16
      %s1911 = sadd.s32 %s1909, %s1910
      %s1912 = smul.addr %s1911, 8
      %s1913 = scalar_lea.vmem %s10, %s1912
      // Predicated region
      $region61: #{up_forward.1} parent=59 // pred_check
        %p1914 = pneg %p337
      $region62: #{up_forward.1} parent=59 // pred_check_branch
        %1916 = sbr.rel (%p1914) target = $region64
      $region63: #{up_forward.1} parent=59 // pred_region
        %s1917 = smul.u32 4, %s26
      $region64: #{up_forward.1} parent=59 // pred_fallthru
        _
    $region60: #{up_forward.1} parent=5 // pred_fallthru
      _
    %p1918 = scmp.le.s32.totalorder 2, %s16
    // Predicated region
    $region65: #{up_forward.1} parent=5 // pred_check
      %p1919 = pneg %p1918
    $region66: #{up_forward.1} parent=5 // pred_check_branch
      %1921 = sbr.rel (%p1919) target = $region68
    $region67: #{up_forward.1} parent=5 // pred_region
      %s1922 = ssub.s32 %s16, 2
      // Predicated region
      $region69: #{up_forward.1} parent=67 // pred_check
        %p1923 = pneg %p343
      $region70: #{up_forward.1} parent=67 // pred_check_branch
        %1925 = sbr.rel (%p1923) target = $region72
      $region71: #{up_forward.1} parent=67 // pred_region
        %s1926 = smul.u32 4, %s28
        %p1927 = scmp.lt.s32.totalorder %s27, 1
        %s1928 = scalar_select %p1927, %s27, 1
        %p1929 = scmp.lt.s32.totalorder %s1926, 7
        %s1930 = scalar_select %p1929, %s1926, 7
        %s1931 = smul.addr %s1930, 2
        %s1932 = smul.addr %s1928, 16
        %s1933 = sadd.s32 %s1931, %s1932
        %s1934 = smul.addr %s1933, 8
        %s1935 = scalar_lea.vmem %s10, %s1934
      $region72: #{up_forward.1} parent=67 // pred_fallthru
        _
    $region68: #{up_forward.1} parent=5 // pred_fallthru
      _
  $region6: #{up_forward.1} parent=0 // loop_footer
    %s20 = sadd.s32 1, %s16
  $region7: #{up_forward.1} parent=0 // loop_footer_branch
    %15 = sbr.rel target = $region3
  $region8: #{up_forward.1} parent=0 // loop_exit
    _

</llo_original>
